<compile_context>
chip_gen: v7x
topology: tpu7x:2x2x1
jax: 0.10.0
libtpu: 0.0.40
codegen_flags: <defaults>
</compile_context>

<pallas_src>
import math
import functools

import jax
import jax.numpy as jnp
from jax.experimental import pallas as pl
from jax.experimental.pallas import tpu as pltpu

EMBED_DIM = 280
NUM_HEADS = 2
HEAD_DIM = EMBED_DIM // NUM_HEADS                    # 140
PAD_HEAD_DIM = ((HEAD_DIM + 127) // 128) * 128       # 256 (lane-aligned head blocks)


def _mha_kernel(x_ref, mask_ref, wqkv_ref, bqkv_ref, wo_ref, bo_ref, o_ref,
                *, num_heads, pad_head_dim):
    # x_ref: (T, E) flat token matrix; all tensors fully resident in VMEM.
    x = x_ref[...]                                                 # (T, E)

    # Single fused QKV projection for all heads (columns are 256-aligned
    # per-head blocks: [q_h | k_h | v_h] per head, zero-padded 140 -> 256).
    proj = jnp.dot(x, wqkv_ref[...],
                   preferred_element_type=jnp.float32) + bqkv_ref[...]  # (T, 3*H*Dp)

    neg_bias = mask_ref[...]                                       # (T, T), 0 / -1e30

    dp = pad_head_dim
    out = jnp.zeros(o_ref.shape, jnp.float32)                      # (T, E)
    for h in range(num_heads):                                     # static, H == 2
        base = 3 * dp * h
        q_h = proj[:, base:base + dp]                              # (T, Dp) aligned slice
        k_h = proj[:, base + dp:base + 2 * dp]                     # (T, Dp)
        v_h = proj[:, base + 2 * dp:base + 3 * dp]                 # (T, Dp)

        # Scores: contract last dims of q_h and k_h (no explicit transpose).
        # Zero-padded tail columns contribute exactly 0. Scaling is folded
        # into the Q weights already.
        s = jax.lax.dot_general(q_h, k_h,
                                dimension_numbers=(((1,), (1,)), ((), ())),
                                preferred_element_type=jnp.float32)  # (T, T)
        s = s + neg_bias                                           # per-sequence mask

        # Numerically stable softmax over keys.
        s = s - jnp.max(s, axis=-1, keepdims=True)
        p = jnp.exp(s)
        p = p * pl.reciprocal(jnp.sum(p, axis=-1, keepdims=True), approx=False)

        ctx_h = jnp.dot(p, v_h, preferred_element_type=jnp.float32)  # (T, Dp)

        # Per-head output projection (padded rows of wo are zero) - no concat.
        out = out + jnp.dot(ctx_h, wo_ref[h],
                            preferred_element_type=jnp.float32)      # (T, E)

    o_ref[...] = (out + bo_ref[...]).astype(o_ref.dtype)


def _prepare_weights(params, num_heads, head_dim, pad_dim):
    """Trace-time constant folds: split/pad per head, fold softmax scaling."""
    e = num_heads * head_dim
    in_w = params["in_proj_weight"]           # (3E, E)
    in_b = params["in_proj_bias"]             # (3E,)
    scaling = 1.0 / math.sqrt(head_dim)

    wq_t = in_w[0 * e:1 * e].T * scaling      # fold scaling into Q
    wk_t = in_w[1 * e:2 * e].T
    wv_t = in_w[2 * e:3 * e].T
    bq = in_b[0 * e:1 * e] * scaling
    bk = in_b[1 * e:2 * e]
    bv = in_b[2 * e:3 * e]

    pad_c = pad_dim - head_dim
    w_blocks, b_blocks = [], []
    for h in range(num_heads):
        sl = slice(h * head_dim, (h + 1) * head_dim)
        for w_t, b in ((wq_t, bq), (wk_t, bk), (wv_t, bv)):
            w_blocks.append(jnp.pad(w_t[:, sl], ((0, 0), (0, pad_c))))
            b_blocks.append(jnp.pad(b[sl], (0, pad_c)))
    w_qkv = jnp.concatenate(w_blocks, axis=1)                 # (E, 3*H*Dp)
    b_qkv = jnp.concatenate(b_blocks).reshape(1, -1)          # (1, 3*H*Dp)

    wo_t = params["out_proj_weight"].T                        # (E, E)
    wo_stack = jnp.stack([
        jnp.pad(wo_t[h * head_dim:(h + 1) * head_dim, :], ((0, pad_c), (0, 0)))
        for h in range(num_heads)
    ])                                                        # (H, Dp, E)
    bo = params["out_proj_bias"].reshape(1, e)                # (1, E)
    return w_qkv, b_qkv, wo_stack, bo


@jax.jit
def multihead_self_attention(x_lne, params):
    """x_lne: (L, N, E) float32, matching PyTorch's MultiheadAttention layout."""
    L, N, E = x_lne.shape
    assert E == EMBED_DIM
    T = L * N
    dp = PAD_HEAD_DIM
    wdim = 3 * NUM_HEADS * dp

    w_qkv, b_qkv, wo_stack, bo = _prepare_weights(params, NUM_HEADS, HEAD_DIM, dp)

    # Free reshape (contiguous dims): token t = l*N + n  ->  sequence id = t % N.
    x_tokens = x_lne.reshape(T, E)
    seq_id = jnp.arange(T, dtype=jnp.int32) % N
    same_seq = seq_id[:, None] == seq_id[None, :]
    neg_bias = jnp.where(same_seq, 0.0, -1e30).astype(jnp.float32)    # (T, T)

    kernel = functools.partial(_mha_kernel, num_heads=NUM_HEADS, pad_head_dim=dp)

    out_tokens = pl.pallas_call(
        kernel,
        out_shape=jax.ShapeDtypeStruct((T, E), jnp.float32),
        grid_spec=pltpu.PrefetchScalarGridSpec(
            num_scalar_prefetch=0,
            grid=(1,),                                        # single step: overhead-bound problem
            in_specs=[
                pl.BlockSpec((T, E), lambda i: (0, 0)),       # x tokens
                pl.BlockSpec((T, T), lambda i: (0, 0)),       # sequence mask bias
                pl.BlockSpec((E, wdim), lambda i: (0, 0)),    # fused padded QKV weight
                pl.BlockSpec((1, wdim), lambda i: (0, 0)),    # fused padded QKV bias
                pl.BlockSpec((NUM_HEADS, dp, E), lambda i: (0, 0, 0)),  # per-head out proj
                pl.BlockSpec((1, E), lambda i: (0, 0)),       # out proj bias
            ],
            out_specs=pl.BlockSpec((T, E), lambda i: (0, 0)),
        ),
        compiler_params=pltpu.CompilerParams(
            dimension_semantics=("arbitrary",),
        ),
    )(x_tokens, neg_bias, w_qkv, b_qkv, wo_stack, bo)

    return out_tokens.reshape(L, N, E)


def _reference(x_lne, params):
    """Pure-JAX reference mirroring F.multi_head_attention_forward (no dropout/mask)."""
    L, N, E = x_lne.shape
    in_w, in_b = params["in_proj_weight"], params["in_proj_bias"]
    wq, wk, wv = in_w[:E], in_w[E:2 * E], in_w[2 * E:]
    bq, bk, bv = in_b[:E], in_b[E:2 * E], in_b[2 * E:]
    q = x_lne @ wq.T + bq
    k = x_lne @ wk.T + bk
    v = x_lne @ wv.T + bv

    def split_heads(t):  # (L, N, E) -> (N, H, L, Dh)
        return jnp.transpose(t.reshape(L, N, NUM_HEADS, HEAD_DIM), (1, 2, 0, 3))

    qh, kh, vh = split_heads(q), split_heads(k), split_heads(v)
    s = jnp.einsum("nhld,nhkd->nhlk", qh / math.sqrt(HEAD_DIM), kh)
    p = jax.nn.softmax(s, axis=-1)
    o = jnp.einsum("nhlk,nhkd->nhld", p, vh)
    o = jnp.transpose(o, (2, 0, 1, 3)).reshape(L, N, E)
    return o @ params["out_proj_weight"].T + params["out_proj_bias"]


def init_params(key):
    k1, k2, k3, k4 = jax.random.split(key, 4)
    scale = 0.05
    return {
        "in_proj_weight": scale * jax.random.normal(k1, (3 * EMBED_DIM, EMBED_DIM), jnp.float32),
        "in_proj_bias": scale * jax.random.normal(k2, (3 * EMBED_DIM,), jnp.float32),
        "out_proj_weight": scale * jax.random.normal(k3, (EMBED_DIM, EMBED_DIM), jnp.float32),
        "out_proj_bias": scale * jax.random.normal(k4, (EMBED_DIM,), jnp.float32),
    }


if __name__ == "__main__":
    key = jax.random.PRNGKey(0)
    pkey, xkey = jax.random.split(key)

    params = init_params(pkey)

    L, N = 8, 2                                                  # seq len, batch
    x = jax.random.normal(xkey, (L, N, EMBED_DIM), jnp.float32)  # PyTorch (L, N, E)

    out = multihead_self_attention(x, params)
    out = jax.block_until_ready(out)

    ref = _reference(x, params)
    assert out.shape == (L, N, EMBED_DIM)
    assert jnp.allclose(out, ref, rtol=1e-4, atol=1e-4), "mismatch vs reference"

    print("KERNEL_OK")
</pallas_src>

<mosaic_0001>
module attributes {stable_mosaic.version = 11 : i64} {
  func.func @_mha_kernel(%arg0: i32, %arg1: memref<16x280xf32, #tpu.memory_space<vmem>>, %arg2: memref<16x16xf32, #tpu.memory_space<vmem>>, %arg3: memref<280x1536xf32, #tpu.memory_space<vmem>>, %arg4: memref<1x1536xf32, #tpu.memory_space<vmem>>, %arg5: memref<2x256x280xf32, #tpu.memory_space<vmem>>, %arg6: memref<1x280xf32, #tpu.memory_space<vmem>>, %arg7: memref<16x280xf32, #tpu.memory_space<vmem>>) attributes {dimension_semantics = [#tpu.dimension_semantics<arbitrary>], iteration_bounds = array<i64: 1>, scalar_prefetch = 0 : i64, scratch_operands = 0 : i64, tpu.core_type = #tpu.core_type<tc>, window_params = [{pipeline_mode = #tpu.pipeline_mode<synchronous>, transform_indices = @transform_0, window_bounds = array<i64: 16, 280>}, {pipeline_mode = #tpu.pipeline_mode<synchronous>, transform_indices = @transform_1, window_bounds = array<i64: 16, 16>}, {pipeline_mode = #tpu.pipeline_mode<synchronous>, transform_indices = @transform_2, window_bounds = array<i64: 280, 1536>}, {pipeline_mode = #tpu.pipeline_mode<synchronous>, transform_indices = @transform_3, window_bounds = array<i64: 1, 1536>}, {pipeline_mode = #tpu.pipeline_mode<synchronous>, transform_indices = @transform_4, window_bounds = array<i64: 2, 256, 280>}, {pipeline_mode = #tpu.pipeline_mode<synchronous>, transform_indices = @transform_5, window_bounds = array<i64: 1, 280>}, {pipeline_mode = #tpu.pipeline_mode<synchronous>, transform_indices = @transform_6, window_bounds = array<i64: 16, 280>}]} {
    %c0 = arith.constant 0 : index
    %c0_0 = arith.constant 0 : index
    %0 = vector.load %arg1[%c0, %c0_0] : memref<16x280xf32, #tpu.memory_space<vmem>>, vector<16x280xf32>
    %c0_1 = arith.constant 0 : index
    %c0_2 = arith.constant 0 : index
    %1 = vector.load %arg3[%c0_1, %c0_2] : memref<280x1536xf32, #tpu.memory_space<vmem>>, vector<280x1536xf32>
    %cst = arith.constant dense<0.000000e+00> : vector<16x1536xf32>
    %2 = tpu.matmul %0, %1, %cst {dimension_numbers = #tpu.dot_dimension_numbers<[1], [0], [0], [1], [0, 0, 1, 1], [], []>} : vector<16x280xf32>, vector<280x1536xf32>, vector<16x1536xf32> -> vector<16x1536xf32>
    %c0_3 = arith.constant 0 : index
    %c0_4 = arith.constant 0 : index
    %3 = vector.load %arg4[%c0_3, %c0_4] : memref<1x1536xf32, #tpu.memory_space<vmem>>, vector<1x1536xf32>
    %4 = vector.broadcast %3 : vector<1x1536xf32> to vector<16x1536xf32>
    %5 = arith.addf %2, %4 : vector<16x1536xf32>
    %c0_5 = arith.constant 0 : index
    %c0_6 = arith.constant 0 : index
    %6 = vector.load %arg2[%c0_5, %c0_6] : memref<16x16xf32, #tpu.memory_space<vmem>>, vector<16x16xf32>
    %cst_7 = arith.constant 0.000000e+00 : f32
    %7 = vector.broadcast %cst_7 : f32 to vector<16x280xf32>
    %8 = vector.extract_strided_slice %5 {offsets = [0, 0], sizes = [16, 256], strides = [1, 1]} : vector<16x1536xf32> to vector<16x256xf32>
    %9 = vector.extract_strided_slice %5 {offsets = [0, 256], sizes = [16, 256], strides = [1, 1]} : vector<16x1536xf32> to vector<16x256xf32>
    %10 = vector.extract_strided_slice %5 {offsets = [0, 512], sizes = [16, 256], strides = [1, 1]} : vector<16x1536xf32> to vector<16x256xf32>
    %cst_8 = arith.constant dense<0.000000e+00> : vector<16x16xf32>
    %11 = tpu.matmul %8, %9, %cst_8 {dimension_numbers = #tpu.dot_dimension_numbers<[1], [1], [0], [0], [0, 0, 1, 0], [], []>} : vector<16x256xf32>, vector<16x256xf32>, vector<16x16xf32> -> vector<16x16xf32>
    %12 = arith.addf %11, %6 : vector<16x16xf32>
    %cst_9 = arith.constant dense<0xFF800000> : vector<16xf32>
    %13 = vector.multi_reduction <maximumf>, %12, %cst_9 [1] : vector<16x16xf32> to vector<16xf32>
    %14 = vector.shape_cast %13 : vector<16xf32> to vector<16x1xf32>
    %15 = vector.broadcast %14 : vector<16x1xf32> to vector<16x16xf32>
    %16 = arith.subf %12, %15 : vector<16x16xf32>
    %17 = math.exp %16 : vector<16x16xf32>
    %cst_10 = arith.constant dense<0.000000e+00> : vector<16xf32>
    %18 = vector.multi_reduction <add>, %17, %cst_10 [1] : vector<16x16xf32> to vector<16xf32>
    %19 = vector.shape_cast %18 : vector<16xf32> to vector<16x1xf32>
    %20 = tpu.reciprocal %19 : vector<16x1xf32> -> vector<16x1xf32>
    %21 = vector.broadcast %20 : vector<16x1xf32> to vector<16x16xf32>
    %22 = arith.mulf %17, %21 : vector<16x16xf32>
    %cst_11 = arith.constant dense<0.000000e+00> : vector<16x256xf32>
    %23 = tpu.matmul %22, %10, %cst_11 {dimension_numbers = #tpu.dot_dimension_numbers<[1], [0], [0], [1], [0, 0, 1, 1], [], []>} : vector<16x16xf32>, vector<16x256xf32>, vector<16x256xf32> -> vector<16x256xf32>
    %c0_12 = arith.constant 0 : index
    %c0_13 = arith.constant 0 : index
    %c0_14 = arith.constant 0 : index
    %24 = vector.load %arg5[%c0_12, %c0_13, %c0_14] : memref<2x256x280xf32, #tpu.memory_space<vmem>>, vector<1x256x280xf32>
    %25 = vector.shape_cast %24 : vector<1x256x280xf32> to vector<256x280xf32>
    %cst_15 = arith.constant dense<0.000000e+00> : vector<16x280xf32>
    %26 = tpu.matmul %23, %25, %cst_15 {dimension_numbers = #tpu.dot_dimension_numbers<[1], [0], [0], [1], [0, 0, 1, 1], [], []>} : vector<16x256xf32>, vector<256x280xf32>, vector<16x280xf32> -> vector<16x280xf32>
    %27 = arith.addf %7, %26 : vector<16x280xf32>
    %28 = vector.extract_strided_slice %5 {offsets = [0, 768], sizes = [16, 256], strides = [1, 1]} : vector<16x1536xf32> to vector<16x256xf32>
    %29 = vector.extract_strided_slice %5 {offsets = [0, 1024], sizes = [16, 256], strides = [1, 1]} : vector<16x1536xf32> to vector<16x256xf32>
    %30 = vector.extract_strided_slice %5 {offsets = [0, 1280], sizes = [16, 256], strides = [1, 1]} : vector<16x1536xf32> to vector<16x256xf32>
    %cst_16 = arith.constant dense<0.000000e+00> : vector<16x16xf32>
    %31 = tpu.matmul %28, %29, %cst_16 {dimension_numbers = #tpu.dot_dimension_numbers<[1], [1], [0], [0], [0, 0, 1, 0], [], []>} : vector<16x256xf32>, vector<16x256xf32>, vector<16x16xf32> -> vector<16x16xf32>
    %32 = arith.addf %31, %6 : vector<16x16xf32>
    %cst_17 = arith.constant dense<0xFF800000> : vector<16xf32>
    %33 = vector.multi_reduction <maximumf>, %32, %cst_17 [1] : vector<16x16xf32> to vector<16xf32>
    %34 = vector.shape_cast %33 : vector<16xf32> to vector<16x1xf32>
    %35 = vector.broadcast %34 : vector<16x1xf32> to vector<16x16xf32>
    %36 = arith.subf %32, %35 : vector<16x16xf32>
    %37 = math.exp %36 : vector<16x16xf32>
    %cst_18 = arith.constant dense<0.000000e+00> : vector<16xf32>
    %38 = vector.multi_reduction <add>, %37, %cst_18 [1] : vector<16x16xf32> to vector<16xf32>
    %39 = vector.shape_cast %38 : vector<16xf32> to vector<16x1xf32>
    %40 = tpu.reciprocal %39 : vector<16x1xf32> -> vector<16x1xf32>
    %41 = vector.broadcast %40 : vector<16x1xf32> to vector<16x16xf32>
    %42 = arith.mulf %37, %41 : vector<16x16xf32>
    %cst_19 = arith.constant dense<0.000000e+00> : vector<16x256xf32>
    %43 = tpu.matmul %42, %30, %cst_19 {dimension_numbers = #tpu.dot_dimension_numbers<[1], [0], [0], [1], [0, 0, 1, 1], [], []>} : vector<16x16xf32>, vector<16x256xf32>, vector<16x256xf32> -> vector<16x256xf32>
    %c1 = arith.constant 1 : index
    %c0_20 = arith.constant 0 : index
    %c0_21 = arith.constant 0 : index
    %44 = vector.load %arg5[%c1, %c0_20, %c0_21] : memref<2x256x280xf32, #tpu.memory_space<vmem>>, vector<1x256x280xf32>
    %45 = vector.shape_cast %44 : vector<1x256x280xf32> to vector<256x280xf32>
    %cst_22 = arith.constant dense<0.000000e+00> : vector<16x280xf32>
    %46 = tpu.matmul %43, %45, %cst_22 {dimension_numbers = #tpu.dot_dimension_numbers<[1], [0], [0], [1], [0, 0, 1, 1], [], []>} : vector<16x256xf32>, vector<256x280xf32>, vector<16x280xf32> -> vector<16x280xf32>
    %47 = arith.addf %27, %46 : vector<16x280xf32>
    %c0_23 = arith.constant 0 : index
    %c0_24 = arith.constant 0 : index
    %48 = vector.load %arg6[%c0_23, %c0_24] : memref<1x280xf32, #tpu.memory_space<vmem>>, vector<1x280xf32>
    %49 = vector.broadcast %48 : vector<1x280xf32> to vector<16x280xf32>
    %50 = arith.addf %47, %49 : vector<16x280xf32>
    %c0_25 = arith.constant 0 : index
    %c0_26 = arith.constant 0 : index
    %51 = vector.load %arg7[%c0_25, %c0_26] : memref<16x280xf32, #tpu.memory_space<vmem>>, vector<16x280xf32>
    tpu.vector_store %arg7[%c0_25, %c0_26], %50 {strides = array<i32>} : memref<16x280xf32, #tpu.memory_space<vmem>>, vector<16x280xf32>,
    return
  }
  func.func @transform_0(%arg0: i32) -> (i32, i32) {
    %c0_i32 = arith.constant 0 : i32
    %c0_i32_0 = arith.constant 0 : i32
    %c0_i32_1 = arith.constant 0 : i32
    return %c0_i32, %c0_i32_0 : i32, i32
  }
  func.func @transform_1(%arg0: i32) -> (i32, i32) {
    %c0_i32 = arith.constant 0 : i32
    %c0_i32_0 = arith.constant 0 : i32
    %c0_i32_1 = arith.constant 0 : i32
    return %c0_i32, %c0_i32_0 : i32, i32
  }
  func.func @transform_2(%arg0: i32) -> (i32, i32) {
    %c0_i32 = arith.constant 0 : i32
    %c0_i32_0 = arith.constant 0 : i32
    %c0_i32_1 = arith.constant 0 : i32
    return %c0_i32, %c0_i32_0 : i32, i32
  }
  func.func @transform_3(%arg0: i32) -> (i32, i32) {
    %c0_i32 = arith.constant 0 : i32
    %c0_i32_0 = arith.constant 0 : i32
    %c0_i32_1 = arith.constant 0 : i32
    return %c0_i32, %c0_i32_0 : i32, i32
  }
  func.func @transform_4(%arg0: i32) -> (i32, i32, i32) {
    %c0_i32 = arith.constant 0 : i32
    %c0_i32_0 = arith.constant 0 : i32
    %c0_i32_1 = arith.constant 0 : i32
    %c0_i32_2 = arith.constant 0 : i32
    return %c0_i32, %c0_i32_0, %c0_i32_1 : i32, i32, i32
  }
  func.func @transform_5(%arg0: i32) -> (i32, i32) {
    %c0_i32 = arith.constant 0 : i32
    %c0_i32_0 = arith.constant 0 : i32
    %c0_i32_1 = arith.constant 0 : i32
    return %c0_i32, %c0_i32_0 : i32, i32
  }
  func.func @transform_6(%arg0: i32) -> (i32, i32) {
    %c0_i32 = arith.constant 0 : i32
    %c0_i32_0 = arith.constant 0 : i32
    %c0_i32_1 = arith.constant 0 : i32
    return %c0_i32, %c0_i32_0 : i32, i32
  }
}

</mosaic_0001>

<llo_original>
// kernel: custom-call
$region0: #{custom-call}
  %s0 = inlined_call_operand.vmem [shape: f32[1536], index: 0, kind: output, shape index: {}]

// kernel: multihead_self_attention.1
$region0: #{multihead_self_attention.1}
  #allocation0 [shape = 'u32[]', space=smem, size = 0x4, offset = 0x4, fixed_abs, tag = 'smem constant byte address 0x4 - core index']
  #allocation1 [shape = 'u32[144,128]{1,0:T(1,128)}', space=vmem, size = 0x12000, scoped, tag = 'internal scratch']
  %s0 = inlined_call_operand.vmem [shape: f32[16,280], index: 0, kind: input, shape index: {}]
  %s1 = inlined_call_operand.vmem [shape: f32[16,16], index: 1, kind: input, shape index: {}]
  %s2 = inlined_call_operand.vmem [shape: f32[280,1536], index: 2, kind: input, shape index: {}]
  %s3 = inlined_call_operand.vmem [shape: f32[1,1536], index: 3, kind: input, shape index: {}]
  %s4 = inlined_call_operand.vmem [shape: f32[2,256,280], index: 4, kind: input, shape index: {}]
  %s5 = inlined_call_operand.vmem [shape: f32[1,280], index: 5, kind: input, shape index: {}]
  %s6 = inlined_call_operand.vmem [shape: f32[16,280], index: 6, kind: output, shape index: {}]
  %s7 = sld [smem:[#allocation0]]
  $region34: #{multihead_self_attention.1} parent=0
    _
  %s9 = ssub.s32 1, %s7
  %s10 = scalar_select 0, %s9, %s7
  // Predicated region
  $region2: #{multihead_self_attention.1} parent=0 // pred_check
    _
  $region3: #{multihead_self_attention.1} parent=0 // pred_check_branch
    %12 = sbr.rel (0) target = $region5
  $region4: #{multihead_self_attention.1} parent=0 // pred_region
    _
  $region5: #{multihead_self_attention.1} parent=0 // pred_fallthru
    _
  // Predicated region
  $region6: #{multihead_self_attention.1} parent=0 // pred_check
    _
  $region7: #{multihead_self_attention.1} parent=0 // pred_check_branch
    %14 = sbr.rel (0) target = $region9
  $region8: #{multihead_self_attention.1} parent=0 // pred_region
    _
  $region9: #{multihead_self_attention.1} parent=0 // pred_fallthru
    _
  // Predicated region
  $region10: #{multihead_self_attention.1} parent=0 // pred_check
    _
  $region11: #{multihead_self_attention.1} parent=0 // pred_check_branch
    %16 = sbr.rel (0) target = $region13
  $region12: #{multihead_self_attention.1} parent=0 // pred_region
    _
  $region13: #{multihead_self_attention.1} parent=0 // pred_fallthru
    _
  // Predicated region
  $region14: #{multihead_self_attention.1} parent=0 // pred_check
    _
  $region15: #{multihead_self_attention.1} parent=0 // pred_check_branch
    %18 = sbr.rel (0) target = $region17
  $region16: #{multihead_self_attention.1} parent=0 // pred_region
    _
  $region17: #{multihead_self_attention.1} parent=0 // pred_fallthru
    _
  // Predicated region
  $region18: #{multihead_self_attention.1} parent=0 // pred_check
    _
  $region19: #{multihead_self_attention.1} parent=0 // pred_check_branch
    %20 = sbr.rel (0) target = $region21
  $region20: #{multihead_self_attention.1} parent=0 // pred_region
    _
  $region21: #{multihead_self_attention.1} parent=0 // pred_fallthru
    _
  // Predicated region
  $region22: #{multihead_self_attention.1} parent=0 // pred_check
    _
  $region23: #{multihead_self_attention.1} parent=0 // pred_check_branch
    %22 = sbr.rel (0) target = $region25
  $region24: #{multihead_self_attention.1} parent=0 // pred_region
    _
  $region25: #{multihead_self_attention.1} parent=0 // pred_fallthru
    _
  %v23 = vld [vmem:[%s0] sm:$0xff]
  %v24 = vld [vmem:[%s0 + $0x8] sm:$0xff]
  %v25 = vld [vmem:[%s0 + $0x10] sm:$0xff]
  %v26 = vld [vmem:[%s0 + $0x18] sm:$0xff]
  %v27 = vld [vmem:[%s0 + $0x20] sm:$0xff]
  %v28 = vld [vmem:[%s0 + $0x28] sm:$0xff]
  %v29 = vld [vmem:[%s2] sm:$0xff]
  %v30 = vld [vmem:[%s2 + $0x8] sm:$0xff]
  %v31 = vld [vmem:[%s2 + $0x10] sm:$0xff]
  %v32 = vld [vmem:[%s2 + $0x18] sm:$0xff]
  %v33 = vld [vmem:[%s2 + $0x20] sm:$0xff]
  %v34 = vld [vmem:[%s2 + $0x28] sm:$0xff]
  %v35 = vld [vmem:[%s2 + $0x30] sm:$0xff]
  %v36 = vld [vmem:[%s2 + $0x38] sm:$0xff]
  %v37 = vld [vmem:[%s2 + $0x40] sm:$0xff]
  %v38 = vld [vmem:[%s2 + $0x48] sm:$0xff]
  %v39 = vld [vmem:[%s2 + $0x50] sm:$0xff]
  %v40 = vld [vmem:[%s2 + $0x58] sm:$0xff]
  %v41 = vld [vmem:[%s2 + $0x60] sm:$0xff]
  %v42 = vld [vmem:[%s2 + $0x68] sm:$0xff]
  %v43 = vld [vmem:[%s2 + $0x70] sm:$0xff]
  %v44 = vld [vmem:[%s2 + $0x78] sm:$0xff]
  %v45 = vld [vmem:[%s2 + $0x80] sm:$0xff]
  %v46 = vld [vmem:[%s2 + $0x88] sm:$0xff]
  %v47 = vld [vmem:[%s2 + $0x90] sm:$0xff]
  %v48 = vld [vmem:[%s2 + $0x98] sm:$0xff]
  %v49 = vld [vmem:[%s2 + $0xa0] sm:$0xff]
  %v50 = vld [vmem:[%s2 + $0xa8] sm:$0xff]
  %v51 = vld [vmem:[%s2 + $0xb0] sm:$0xff]
  %v52 = vld [vmem:[%s2 + $0xb8] sm:$0xff]
  %v53 = vld [vmem:[%s2 + $0xc0] sm:$0xff]
  %v54 = vld [vmem:[%s2 + $0xc8] sm:$0xff]
  %v55 = vld [vmem:[%s2 + $0xd0] sm:$0xff]
  %v56 = vld [vmem:[%s2 + $0xd8] sm:$0xff]
  %v57 = vld [vmem:[%s2 + $0xe0] sm:$0xff]
  %v58 = vld [vmem:[%s2 + $0xe8] sm:$0xff]
  %v59 = vld [vmem:[%s2 + $0xf0] sm:$0xff]
  %v60 = vld [vmem:[%s2 + $0xf8] sm:$0xff]
  %v61 = vld [vmem:[%s2 + $0x100] sm:$0xff]
  %v62 = vld [vmem:[%s2 + $0x108] sm:$0xff]
  %v63 = vld [vmem:[%s2 + $0x110] sm:$0xff]
  %v64 = vld [vmem:[%s2 + $0x118] sm:$0xff]
  %v65 = vld [vmem:[%s2 + $0x120] sm:$0xff]
  %v66 = vld [vmem:[%s2 + $0x128] sm:$0xff]
  %v67 = vld [vmem:[%s2 + $0x130] sm:$0xff]
  %v68 = vld [vmem:[%s2 + $0x138] sm:$0xff]
  %v69 = vld [vmem:[%s2 + $0x140] sm:$0xff]
  %v70 = vld [vmem:[%s2 + $0x148] sm:$0xff]
  %v71 = vld [vmem:[%s2 + $0x150] sm:$0xff]
  %v72 = vld [vmem:[%s2 + $0x158] sm:$0xff]
  %v73 = vld [vmem:[%s2 + $0x160] sm:$0xff]
  %v74 = vld [vmem:[%s2 + $0x168] sm:$0xff]
  %v75 = vld [vmem:[%s2 + $0x170] sm:$0xff]
  %v76 = vld [vmem:[%s2 + $0x178] sm:$0xff]
  %v77 = vld [vmem:[%s2 + $0x180] sm:$0xff]
  %v78 = vld [vmem:[%s2 + $0x188] sm:$0xff]
  %v79 = vld [vmem:[%s2 + $0x190] sm:$0xff]
  %v80 = vld [vmem:[%s2 + $0x198] sm:$0xff]
  %v81 = vld [vmem:[%s2 + $0x1a0] sm:$0xff]
  %v82 = vld [vmem:[%s2 + $0x1a8] sm:$0xff]
  %v83 = vld [vmem:[%s2 + $0x1b0] sm:$0xff]
  %v84 = vld [vmem:[%s2 + $0x1b8] sm:$0xff]
  %v85 = vld [vmem:[%s2 + $0x1c0] sm:$0xff]
  %v86 = vld [vmem:[%s2 + $0x1c8] sm:$0xff]
  %v87 = vld [vmem:[%s2 + $0x1d0] sm:$0xff]
  %v88 = vld [vmem:[%s2 + $0x1d8] sm:$0xff]
  %v89 = vld [vmem:[%s2 + $0x1e0] sm:$0xff]
  %v90 = vld [vmem:[%s2 + $0x1e8] sm:$0xff]
  %v91 = vld [vmem:[%s2 + $0x1f0] sm:$0xff]
  %v92 = vld [vmem:[%s2 + $0x1f8] sm:$0xff]
  %v93 = vld [vmem:[%s2 + $0x200] sm:$0xff]
  %v94 = vld [vmem:[%s2 + $0x208] sm:$0xff]
  %v95 = vld [vmem:[%s2 + $0x210] sm:$0xff]
  %v96 = vld [vmem:[%s2 + $0x218] sm:$0xff]
  %v97 = vld [vmem:[%s2 + $0x220] sm:$0xff]
  %v98 = vld [vmem:[%s2 + $0x228] sm:$0xff]
  %v99 = vld [vmem:[%s2 + $0x230] sm:$0xff]
  %v100 = vld [vmem:[%s2 + $0x238] sm:$0xff]
  %v101 = vld [vmem:[%s2 + $0x240] sm:$0xff]
  %v102 = vld [vmem:[%s2 + $0x248] sm:$0xff]
  %v103 = vld [vmem:[%s2 + $0x250] sm:$0xff]
  %v104 = vld [vmem:[%s2 + $0x258] sm:$0xff]
  %v105 = vld [vmem:[%s2 + $0x260] sm:$0xff]
  %v106 = vld [vmem:[%s2 + $0x268] sm:$0xff]
  %v107 = vld [vmem:[%s2 + $0x270] sm:$0xff]
  %v108 = vld [vmem:[%s2 + $0x278] sm:$0xff]
  %v109 = vld [vmem:[%s2 + $0x280] sm:$0xff]
  %v110 = vld [vmem:[%s2 + $0x288] sm:$0xff]
  %v111 = vld [vmem:[%s2 + $0x290] sm:$0xff]
  %v112 = vld [vmem:[%s2 + $0x298] sm:$0xff]
  %v113 = vld [vmem:[%s2 + $0x2a0] sm:$0xff]
  %v114 = vld [vmem:[%s2 + $0x2a8] sm:$0xff]
  %v115 = vld [vmem:[%s2 + $0x2b0] sm:$0xff]
  %v116 = vld [vmem:[%s2 + $0x2b8] sm:$0xff]
  %v117 = vld [vmem:[%s2 + $0x2c0] sm:$0xff]
  %v118 = vld [vmem:[%s2 + $0x2c8] sm:$0xff]
  %v119 = vld [vmem:[%s2 + $0x2d0] sm:$0xff]
  %v120 = vld [vmem:[%s2 + $0x2d8] sm:$0xff]
  %v121 = vld [vmem:[%s2 + $0x2e0] sm:$0xff]
  %v122 = vld [vmem:[%s2 + $0x2e8] sm:$0xff]
  %v123 = vld [vmem:[%s2 + $0x2f0] sm:$0xff]
  %v124 = vld [vmem:[%s2 + $0x2f8] sm:$0xff]
  %v125 = vld [vmem:[%s2 + $0x300] sm:$0xff]
  %v126 = vld [vmem:[%s2 + $0x308] sm:$0xff]
  %v127 = vld [vmem:[%s2 + $0x310] sm:$0xff]
  %v128 = vld [vmem:[%s2 + $0x318] sm:$0xff]
  %v129 = vld [vmem:[%s2 + $0x320] sm:$0xff]
  %v130 = vld [vmem:[%s2 + $0x328] sm:$0xff]
  %v131 = vld [vmem:[%s2 + $0x330] sm:$0xff]
  %v132 = vld [vmem:[%s2 + $0x338] sm:$0xff]
  %v133 = vld [vmem:[%s2 + $0x340] sm:$0xff]
  %v134 = vld [vmem:[%s2 + $0x348] sm:$0xff]
  %v135 = vld [vmem:[%s2 + $0x350] sm:$0xff]
  %v136 = vld [vmem:[%s2 + $0x358] sm:$0xff]
  %v137 = vld [vmem:[%s2 + $0x360] sm:$0xff]
  %v138 = vld [vmem:[%s2 + $0x368] sm:$0xff]
  %v139 = vld [vmem:[%s2 + $0x370] sm:$0xff]
  %v140 = vld [vmem:[%s2 + $0x378] sm:$0xff]
  %v141 = vld [vmem:[%s2 + $0x380] sm:$0xff]
  %v142 = vld [vmem:[%s2 + $0x388] sm:$0xff]
  %v143 = vld [vmem:[%s2 + $0x390] sm:$0xff]
  %v144 = vld [vmem:[%s2 + $0x398] sm:$0xff]
  %v145 = vld [vmem:[%s2 + $0x3a0] sm:$0xff]
  %v146 = vld [vmem:[%s2 + $0x3a8] sm:$0xff]
  %v147 = vld [vmem:[%s2 + $0x3b0] sm:$0xff]
  %v148 = vld [vmem:[%s2 + $0x3b8] sm:$0xff]
  %v149 = vld [vmem:[%s2 + $0x3c0] sm:$0xff]
  %v150 = vld [vmem:[%s2 + $0x3c8] sm:$0xff]
  %v151 = vld [vmem:[%s2 + $0x3d0] sm:$0xff]
  %v152 = vld [vmem:[%s2 + $0x3d8] sm:$0xff]
  %v153 = vld [vmem:[%s2 + $0x3e0] sm:$0xff]
  %v154 = vld [vmem:[%s2 + $0x3e8] sm:$0xff]
  %v155 = vld [vmem:[%s2 + $0x3f0] sm:$0xff]
  %v156 = vld [vmem:[%s2 + $0x3f8] sm:$0xff]
  %v157 = vld [vmem:[%s2 + $0x400] sm:$0xff]
  %v158 = vld [vmem:[%s2 + $0x408] sm:$0xff]
  %v159 = vld [vmem:[%s2 + $0x410] sm:$0xff]
  %v160 = vld [vmem:[%s2 + $0x418] sm:$0xff]
  %v161 = vld [vmem:[%s2 + $0x420] sm:$0xff]
  %v162 = vld [vmem:[%s2 + $0x428] sm:$0xff]
  %v163 = vld [vmem:[%s2 + $0x430] sm:$0xff]
  %v164 = vld [vmem:[%s2 + $0x438] sm:$0xff]
  %v165 = vld [vmem:[%s2 + $0x440] sm:$0xff]
  %v166 = vld [vmem:[%s2 + $0x448] sm:$0xff]
  %v167 = vld [vmem:[%s2 + $0x450] sm:$0xff]
  %v168 = vld [vmem:[%s2 + $0x458] sm:$0xff]
  %v169 = vld [vmem:[%s2 + $0x460] sm:$0xff]
  %v170 = vld [vmem:[%s2 + $0x468] sm:$0xff]
  %v171 = vld [vmem:[%s2 + $0x470] sm:$0xff]
  %v172 = vld [vmem:[%s2 + $0x478] sm:$0xff]
  %v173 = vld [vmem:[%s2 + $0x480] sm:$0xff]
  %v174 = vld [vmem:[%s2 + $0x488] sm:$0xff]
  %v175 = vld [vmem:[%s2 + $0x490] sm:$0xff]
  %v176 = vld [vmem:[%s2 + $0x498] sm:$0xff]
  %v177 = vld [vmem:[%s2 + $0x4a0] sm:$0xff]
  %v178 = vld [vmem:[%s2 + $0x4a8] sm:$0xff]
  %v179 = vld [vmem:[%s2 + $0x4b0] sm:$0xff]
  %v180 = vld [vmem:[%s2 + $0x4b8] sm:$0xff]
  %v181 = vld [vmem:[%s2 + $0x4c0] sm:$0xff]
  %v182 = vld [vmem:[%s2 + $0x4c8] sm:$0xff]
  %v183 = vld [vmem:[%s2 + $0x4d0] sm:$0xff]
  %v184 = vld [vmem:[%s2 + $0x4d8] sm:$0xff]
  %v185 = vld [vmem:[%s2 + $0x4e0] sm:$0xff]
  %v186 = vld [vmem:[%s2 + $0x4e8] sm:$0xff]
  %v187 = vld [vmem:[%s2 + $0x4f0] sm:$0xff]
  %v188 = vld [vmem:[%s2 + $0x4f8] sm:$0xff]
  %v189 = vld [vmem:[%s2 + $0x500] sm:$0xff]
  %v190 = vld [vmem:[%s2 + $0x508] sm:$0xff]
  %v191 = vld [vmem:[%s2 + $0x510] sm:$0xff]
  %v192 = vld [vmem:[%s2 + $0x518] sm:$0xff]
  %v193 = vld [vmem:[%s2 + $0x520] sm:$0xff]
  %v194 = vld [vmem:[%s2 + $0x528] sm:$0xff]
  %v195 = vld [vmem:[%s2 + $0x530] sm:$0xff]
  %v196 = vld [vmem:[%s2 + $0x538] sm:$0xff]
  %v197 = vld [vmem:[%s2 + $0x540] sm:$0xff]
  %v198 = vld [vmem:[%s2 + $0x548] sm:$0xff]
  %v199 = vld [vmem:[%s2 + $0x550] sm:$0xff]
  %v200 = vld [vmem:[%s2 + $0x558] sm:$0xff]
  %v201 = vld [vmem:[%s2 + $0x560] sm:$0xff]
  %v202 = vld [vmem:[%s2 + $0x568] sm:$0xff]
  %v203 = vld [vmem:[%s2 + $0x570] sm:$0xff]
  %v204 = vld [vmem:[%s2 + $0x578] sm:$0xff]
  %v205 = vld [vmem:[%s2 + $0x580] sm:$0xff]
  %v206 = vld [vmem:[%s2 + $0x588] sm:$0xff]
  %v207 = vld [vmem:[%s2 + $0x590] sm:$0xff]
  %v208 = vld [vmem:[%s2 + $0x598] sm:$0xff]
  %v209 = vld [vmem:[%s2 + $0x5a0] sm:$0xff]
  %v210 = vld [vmem:[%s2 + $0x5a8] sm:$0xff]
  %v211 = vld [vmem:[%s2 + $0x5b0] sm:$0xff]
  %v212 = vld [vmem:[%s2 + $0x5b8] sm:$0xff]
  %v213 = vld [vmem:[%s2 + $0x5c0] sm:$0xff]
  %v214 = vld [vmem:[%s2 + $0x5c8] sm:$0xff]
  %v215 = vld [vmem:[%s2 + $0x5d0] sm:$0xff]
  %v216 = vld [vmem:[%s2 + $0x5d8] sm:$0xff]
  %v217 = vld [vmem:[%s2 + $0x5e0] sm:$0xff]
  %v218 = vld [vmem:[%s2 + $0x5e8] sm:$0xff]
  %v219 = vld [vmem:[%s2 + $0x5f0] sm:$0xff]
  %v220 = vld [vmem:[%s2 + $0x5f8] sm:$0xff]
  %v221 = vld [vmem:[%s2 + $0x600] sm:$0xff]
  %v222 = vld [vmem:[%s2 + $0x608] sm:$0xff]
  %v223 = vld [vmem:[%s2 + $0x610] sm:$0xff]
  %v224 = vld [vmem:[%s2 + $0x618] sm:$0xff]
  %v225 = vld [vmem:[%s2 + $0x620] sm:$0xff]
  %v226 = vld [vmem:[%s2 + $0x628] sm:$0xff]
  %v227 = vld [vmem:[%s2 + $0x630] sm:$0xff]
  %v228 = vld [vmem:[%s2 + $0x638] sm:$0xff]
  %v229 = vld [vmem:[%s2 + $0x640] sm:$0xff]
  %v230 = vld [vmem:[%s2 + $0x648] sm:$0xff]
  %v231 = vld [vmem:[%s2 + $0x650] sm:$0xff]
  %v232 = vld [vmem:[%s2 + $0x658] sm:$0xff]
  %v233 = vld [vmem:[%s2 + $0x660] sm:$0xff]
  %v234 = vld [vmem:[%s2 + $0x668] sm:$0xff]
  %v235 = vld [vmem:[%s2 + $0x670] sm:$0xff]
  %v236 = vld [vmem:[%s2 + $0x678] sm:$0xff]
  %v237 = vld [vmem:[%s2 + $0x680] sm:$0xff]
  %v238 = vld [vmem:[%s2 + $0x688] sm:$0xff]
  %v239 = vld [vmem:[%s2 + $0x690] sm:$0xff]
  %v240 = vld [vmem:[%s2 + $0x698] sm:$0xff]
  %v241 = vld [vmem:[%s2 + $0x6a0] sm:$0xff]
  %v242 = vld [vmem:[%s2 + $0x6a8] sm:$0xff]
  %v243 = vld [vmem:[%s2 + $0x6b0] sm:$0xff]
  %v244 = vld [vmem:[%s2 + $0x6b8] sm:$0xff]
  %v245 = vld [vmem:[%s2 + $0x6c0] sm:$0xff]
  %v246 = vld [vmem:[%s2 + $0x6c8] sm:$0xff]
  %v247 = vld [vmem:[%s2 + $0x6d0] sm:$0xff]
  %v248 = vld [vmem:[%s2 + $0x6d8] sm:$0xff]
  %v249 = vld [vmem:[%s2 + $0x6e0] sm:$0xff]
  %v250 = vld [vmem:[%s2 + $0x6e8] sm:$0xff]
  %v251 = vld [vmem:[%s2 + $0x6f0] sm:$0xff]
  %v252 = vld [vmem:[%s2 + $0x6f8] sm:$0xff]
  %v253 = vld [vmem:[%s2 + $0x700] sm:$0xff]
  %v254 = vld [vmem:[%s2 + $0x708] sm:$0xff]
  %v255 = vld [vmem:[%s2 + $0x710] sm:$0xff]
  %v256 = vld [vmem:[%s2 + $0x718] sm:$0xff]
  %v257 = vld [vmem:[%s2 + $0x720] sm:$0xff]
  %v258 = vld [vmem:[%s2 + $0x728] sm:$0xff]
  %v259 = vld [vmem:[%s2 + $0x730] sm:$0xff]
  %v260 = vld [vmem:[%s2 + $0x738] sm:$0xff]
  %v261 = vld [vmem:[%s2 + $0x740] sm:$0xff]
  %v262 = vld [vmem:[%s2 + $0x748] sm:$0xff]
  %v263 = vld [vmem:[%s2 + $0x750] sm:$0xff]
  %v264 = vld [vmem:[%s2 + $0x758] sm:$0xff]
  %v265 = vld [vmem:[%s2 + $0x760] sm:$0xff]
  %v266 = vld [vmem:[%s2 + $0x768] sm:$0xff]
  %v267 = vld [vmem:[%s2 + $0x770] sm:$0xff]
  %v268 = vld [vmem:[%s2 + $0x778] sm:$0xff]
  %v269 = vld [vmem:[%s2 + $0x780] sm:$0xff]
  %v270 = vld [vmem:[%s2 + $0x788] sm:$0xff]
  %v271 = vld [vmem:[%s2 + $0x790] sm:$0xff]
  %v272 = vld [vmem:[%s2 + $0x798] sm:$0xff]
  %v273 = vld [vmem:[%s2 + $0x7a0] sm:$0xff]
  %v274 = vld [vmem:[%s2 + $0x7a8] sm:$0xff]
  %v275 = vld [vmem:[%s2 + $0x7b0] sm:$0xff]
  %v276 = vld [vmem:[%s2 + $0x7b8] sm:$0xff]
  %v277 = vld [vmem:[%s2 + $0x7c0] sm:$0xff]
  %v278 = vld [vmem:[%s2 + $0x7c8] sm:$0xff]
  %v279 = vld [vmem:[%s2 + $0x7d0] sm:$0xff]
  %v280 = vld [vmem:[%s2 + $0x7d8] sm:$0xff]
  %v281 = vld [vmem:[%s2 + $0x7e0] sm:$0xff]
  %v282 = vld [vmem:[%s2 + $0x7e8] sm:$0xff]
  %v283 = vld [vmem:[%s2 + $0x7f0] sm:$0xff]
  %v284 = vld [vmem:[%s2 + $0x7f8] sm:$0xff]
  %v285 = vld [vmem:[%s2 + $0x800] sm:$0xff]
  %v286 = vld [vmem:[%s2 + $0x808] sm:$0xff]
  %v287 = vld [vmem:[%s2 + $0x810] sm:$0xff]
  %v288 = vld [vmem:[%s2 + $0x818] sm:$0xff]
  %v289 = vld [vmem:[%s2 + $0x820] sm:$0xff]
  %v290 = vld [vmem:[%s2 + $0x828] sm:$0xff]
  %v291 = vld [vmem:[%s2 + $0x830] sm:$0xff]
  %v292 = vld [vmem:[%s2 + $0x838] sm:$0xff]
  %v293 = vld [vmem:[%s2 + $0x840] sm:$0xff]
  %v294 = vld [vmem:[%s2 + $0x848] sm:$0xff]
  %v295 = vld [vmem:[%s2 + $0x850] sm:$0xff]
  %v296 = vld [vmem:[%s2 + $0x858] sm:$0xff]
  %v297 = vld [vmem:[%s2 + $0x860] sm:$0xff]
  %v298 = vld [vmem:[%s2 + $0x868] sm:$0xff]
  %v299 = vld [vmem:[%s2 + $0x870] sm:$0xff]
  %v300 = vld [vmem:[%s2 + $0x878] sm:$0xff]
  %v301 = vld [vmem:[%s2 + $0x880] sm:$0xff]
  %v302 = vld [vmem:[%s2 + $0x888] sm:$0xff]
  %v303 = vld [vmem:[%s2 + $0x890] sm:$0xff]
  %v304 = vld [vmem:[%s2 + $0x898] sm:$0xff]
  %v305 = vld [vmem:[%s2 + $0x8a0] sm:$0xff]
  %v306 = vld [vmem:[%s2 + $0x8a8] sm:$0xff]
  %v307 = vld [vmem:[%s2 + $0x8b0] sm:$0xff]
  %v308 = vld [vmem:[%s2 + $0x8b8] sm:$0xff]
  %v309 = vld [vmem:[%s2 + $0x8c0] sm:$0xff]
  %v310 = vld [vmem:[%s2 + $0x8c8] sm:$0xff]
  %v311 = vld [vmem:[%s2 + $0x8d0] sm:$0xff]
  %v312 = vld [vmem:[%s2 + $0x8d8] sm:$0xff]
  %v313 = vld [vmem:[%s2 + $0x8e0] sm:$0xff]
  %v314 = vld [vmem:[%s2 + $0x8e8] sm:$0xff]
  %v315 = vld [vmem:[%s2 + $0x8f0] sm:$0xff]
  %v316 = vld [vmem:[%s2 + $0x8f8] sm:$0xff]
  %v317 = vld [vmem:[%s2 + $0x900] sm:$0xff]
  %v318 = vld [vmem:[%s2 + $0x908] sm:$0xff]
  %v319 = vld [vmem:[%s2 + $0x910] sm:$0xff]
  %v320 = vld [vmem:[%s2 + $0x918] sm:$0xff]
  %v321 = vld [vmem:[%s2 + $0x920] sm:$0xff]
  %v322 = vld [vmem:[%s2 + $0x928] sm:$0xff]
  %v323 = vld [vmem:[%s2 + $0x930] sm:$0xff]
  %v324 = vld [vmem:[%s2 + $0x938] sm:$0xff]
  %v325 = vld [vmem:[%s2 + $0x940] sm:$0xff]
  %v326 = vld [vmem:[%s2 + $0x948] sm:$0xff]
  %v327 = vld [vmem:[%s2 + $0x950] sm:$0xff]
  %v328 = vld [vmem:[%s2 + $0x958] sm:$0xff]
  %v329 = vld [vmem:[%s2 + $0x960] sm:$0xff]
  %v330 = vld [vmem:[%s2 + $0x968] sm:$0xff]
  %v331 = vld [vmem:[%s2 + $0x970] sm:$0xff]
  %v332 = vld [vmem:[%s2 + $0x978] sm:$0xff]
  %v333 = vld [vmem:[%s2 + $0x980] sm:$0xff]
  %v334 = vld [vmem:[%s2 + $0x988] sm:$0xff]
  %v335 = vld [vmem:[%s2 + $0x990] sm:$0xff]
  %v336 = vld [vmem:[%s2 + $0x998] sm:$0xff]
  %v337 = vld [vmem:[%s2 + $0x9a0] sm:$0xff]
  %v338 = vld [vmem:[%s2 + $0x9a8] sm:$0xff]
  %v339 = vld [vmem:[%s2 + $0x9b0] sm:$0xff]
  %v340 = vld [vmem:[%s2 + $0x9b8] sm:$0xff]
  %v341 = vld [vmem:[%s2 + $0x9c0] sm:$0xff]
  %v342 = vld [vmem:[%s2 + $0x9c8] sm:$0xff]
  %v343 = vld [vmem:[%s2 + $0x9d0] sm:$0xff]
  %v344 = vld [vmem:[%s2 + $0x9d8] sm:$0xff]
  %v345 = vld [vmem:[%s2 + $0x9e0] sm:$0xff]
  %v346 = vld [vmem:[%s2 + $0x9e8] sm:$0xff]
  %v347 = vld [vmem:[%s2 + $0x9f0] sm:$0xff]
  %v348 = vld [vmem:[%s2 + $0x9f8] sm:$0xff]
  %v349 = vld [vmem:[%s2 + $0xa00] sm:$0xff]
  %v350 = vld [vmem:[%s2 + $0xa08] sm:$0xff]
  %v351 = vld [vmem:[%s2 + $0xa10] sm:$0xff]
  %v352 = vld [vmem:[%s2 + $0xa18] sm:$0xff]
  %v353 = vld [vmem:[%s2 + $0xa20] sm:$0xff]
  %v354 = vld [vmem:[%s2 + $0xa28] sm:$0xff]
  %v355 = vld [vmem:[%s2 + $0xa30] sm:$0xff]
  %v356 = vld [vmem:[%s2 + $0xa38] sm:$0xff]
  %v357 = vld [vmem:[%s2 + $0xa40] sm:$0xff]
  %v358 = vld [vmem:[%s2 + $0xa48] sm:$0xff]
  %v359 = vld [vmem:[%s2 + $0xa50] sm:$0xff]
  %v360 = vld [vmem:[%s2 + $0xa58] sm:$0xff]
  %v361 = vld [vmem:[%s2 + $0xa60] sm:$0xff]
  %v362 = vld [vmem:[%s2 + $0xa68] sm:$0xff]
  %v363 = vld [vmem:[%s2 + $0xa70] sm:$0xff]
  %v364 = vld [vmem:[%s2 + $0xa78] sm:$0xff]
  %v365 = vld [vmem:[%s2 + $0xa80] sm:$0xff]
  %v366 = vld [vmem:[%s2 + $0xa88] sm:$0xff]
  %v367 = vld [vmem:[%s2 + $0xa90] sm:$0xff]
  %v368 = vld [vmem:[%s2 + $0xa98] sm:$0xff]
  %v369 = vld [vmem:[%s2 + $0xaa0] sm:$0xff]
  %v370 = vld [vmem:[%s2 + $0xaa8] sm:$0xff]
  %v371 = vld [vmem:[%s2 + $0xab0] sm:$0xff]
  %v372 = vld [vmem:[%s2 + $0xab8] sm:$0xff]
  %v373 = vld [vmem:[%s2 + $0xac0] sm:$0xff]
  %v374 = vld [vmem:[%s2 + $0xac8] sm:$0xff]
  %v375 = vld [vmem:[%s2 + $0xad0] sm:$0xff]
  %v376 = vld [vmem:[%s2 + $0xad8] sm:$0xff]
  %v377 = vld [vmem:[%s2 + $0xae0] sm:$0xff]
  %v378 = vld [vmem:[%s2 + $0xae8] sm:$0xff]
  %v379 = vld [vmem:[%s2 + $0xaf0] sm:$0xff]
  %v380 = vld [vmem:[%s2 + $0xaf8] sm:$0xff]
  %v381 = vld [vmem:[%s2 + $0xb00] sm:$0xff]
  %v382 = vld [vmem:[%s2 + $0xb08] sm:$0xff]
  %v383 = vld [vmem:[%s2 + $0xb10] sm:$0xff]
  %v384 = vld [vmem:[%s2 + $0xb18] sm:$0xff]
  %v385 = vld [vmem:[%s2 + $0xb20] sm:$0xff]
  %v386 = vld [vmem:[%s2 + $0xb28] sm:$0xff]
  %v387 = vld [vmem:[%s2 + $0xb30] sm:$0xff]
  %v388 = vld [vmem:[%s2 + $0xb38] sm:$0xff]
  %v389 = vld [vmem:[%s2 + $0xb40] sm:$0xff]
  %v390 = vld [vmem:[%s2 + $0xb48] sm:$0xff]
  %v391 = vld [vmem:[%s2 + $0xb50] sm:$0xff]
  %v392 = vld [vmem:[%s2 + $0xb58] sm:$0xff]
  %v393 = vld [vmem:[%s2 + $0xb60] sm:$0xff]
  %v394 = vld [vmem:[%s2 + $0xb68] sm:$0xff]
  %v395 = vld [vmem:[%s2 + $0xb70] sm:$0xff]
  %v396 = vld [vmem:[%s2 + $0xb78] sm:$0xff]
  %v397 = vld [vmem:[%s2 + $0xb80] sm:$0xff]
  %v398 = vld [vmem:[%s2 + $0xb88] sm:$0xff]
  %v399 = vld [vmem:[%s2 + $0xb90] sm:$0xff]
  %v400 = vld [vmem:[%s2 + $0xb98] sm:$0xff]
  %v401 = vld [vmem:[%s2 + $0xba0] sm:$0xff]
  %v402 = vld [vmem:[%s2 + $0xba8] sm:$0xff]
  %v403 = vld [vmem:[%s2 + $0xbb0] sm:$0xff]
  %v404 = vld [vmem:[%s2 + $0xbb8] sm:$0xff]
  %v405 = vld [vmem:[%s2 + $0xbc0] sm:$0xff]
  %v406 = vld [vmem:[%s2 + $0xbc8] sm:$0xff]
  %v407 = vld [vmem:[%s2 + $0xbd0] sm:$0xff]
  %v408 = vld [vmem:[%s2 + $0xbd8] sm:$0xff]
  %v409 = vld [vmem:[%s2 + $0xbe0] sm:$0xff]
  %v410 = vld [vmem:[%s2 + $0xbe8] sm:$0xff]
  %v411 = vld [vmem:[%s2 + $0xbf0] sm:$0xff]
  %v412 = vld [vmem:[%s2 + $0xbf8] sm:$0xff]
  %v413 = vld [vmem:[%s2 + $0xc00] sm:$0xff]
  %v414 = vld [vmem:[%s2 + $0xc08] sm:$0xff]
  %v415 = vld [vmem:[%s2 + $0xc10] sm:$0xff]
  %v416 = vld [vmem:[%s2 + $0xc18] sm:$0xff]
  %v417 = vld [vmem:[%s2 + $0xc20] sm:$0xff]
  %v418 = vld [vmem:[%s2 + $0xc28] sm:$0xff]
  %v419 = vld [vmem:[%s2 + $0xc30] sm:$0xff]
  %v420 = vld [vmem:[%s2 + $0xc38] sm:$0xff]
  %v421 = vld [vmem:[%s2 + $0xc40] sm:$0xff]
  %v422 = vld [vmem:[%s2 + $0xc48] sm:$0xff]
  %v423 = vld [vmem:[%s2 + $0xc50] sm:$0xff]
  %v424 = vld [vmem:[%s2 + $0xc58] sm:$0xff]
  %v425 = vld [vmem:[%s2 + $0xc60] sm:$0xff]
  %v426 = vld [vmem:[%s2 + $0xc68] sm:$0xff]
  %v427 = vld [vmem:[%s2 + $0xc70] sm:$0xff]
  %v428 = vld [vmem:[%s2 + $0xc78] sm:$0xff]
  %v429 = vld [vmem:[%s2 + $0xc80] sm:$0xff]
  %v430 = vld [vmem:[%s2 + $0xc88] sm:$0xff]
  %v431 = vld [vmem:[%s2 + $0xc90] sm:$0xff]
  %v432 = vld [vmem:[%s2 + $0xc98] sm:$0xff]
  %v433 = vld [vmem:[%s2 + $0xca0] sm:$0xff]
  %v434 = vld [vmem:[%s2 + $0xca8] sm:$0xff]
  %v435 = vld [vmem:[%s2 + $0xcb0] sm:$0xff]
  %v436 = vld [vmem:[%s2 + $0xcb8] sm:$0xff]
  %v437 = vld [vmem:[%s2 + $0xcc0] sm:$0xff]
  %v438 = vld [vmem:[%s2 + $0xcc8] sm:$0xff]
  %v439 = vld [vmem:[%s2 + $0xcd0] sm:$0xff]
  %v440 = vld [vmem:[%s2 + $0xcd8] sm:$0xff]
  %v441 = vld [vmem:[%s2 + $0xce0] sm:$0xff]
  %v442 = vld [vmem:[%s2 + $0xce8] sm:$0xff]
  %v443 = vld [vmem:[%s2 + $0xcf0] sm:$0xff]
  %v444 = vld [vmem:[%s2 + $0xcf8] sm:$0xff]
  %v445 = vld [vmem:[%s2 + $0xd00] sm:$0xff]
  %v446 = vld [vmem:[%s2 + $0xd08] sm:$0xff]
  %v447 = vld [vmem:[%s2 + $0xd10] sm:$0xff]
  %v448 = vld [vmem:[%s2 + $0xd18] sm:$0xff]
  %v449 = vld [vmem:[%s3] sm:$0xff]
  %v450 = vld [vmem:[%s3 + $0x8] sm:$0xf]
  %v453 = vlaneseq
  %v454 = vshrl.u32 %v453, 7
  %v455 = vsub.s32 0, %v454
  %v456 = vrot.slane %v449, %v455
  %v457 = vlaneseq
  %v458 = vshrl.u32 %v457, 7
  %v459 = vsub.s32 1, %v458
  %v460 = vrot.slane %v449, %v459
  %v461 = vlaneseq
  %v462 = vshrl.u32 %v461, 7
  %v463 = vsub.s32 2, %v462
  %v464 = vrot.slane %v449, %v463
  %v465 = vlaneseq
  %v466 = vshrl.u32 %v465, 7
  %v467 = vsub.s32 3, %v466
  %v468 = vrot.slane %v449, %v467
  %v469 = vlaneseq
  %v470 = vshrl.u32 %v469, 7
  %v471 = vsub.s32 4, %v470
  %v472 = vrot.slane %v449, %v471
  %v473 = vlaneseq
  %v474 = vshrl.u32 %v473, 7
  %v475 = vsub.s32 5, %v474
  %v476 = vrot.slane %v449, %v475
  %v477 = vlaneseq
  %v478 = vshrl.u32 %v477, 7
  %v479 = vsub.s32 6, %v478
  %v480 = vrot.slane %v449, %v479
  %v481 = vlaneseq
  %v482 = vshrl.u32 %v481, 7
  %v483 = vsub.s32 7, %v482
  %v484 = vrot.slane %v449, %v483
  %v485 = vlaneseq
  %v486 = vshrl.u32 %v485, 7
  %v487 = vsub.s32 0, %v486
  %v488 = vrot.slane %v450, %v487
  %v489 = vlaneseq
  %v490 = vshrl.u32 %v489, 7
  %v491 = vsub.s32 1, %v490
  %v492 = vrot.slane %v450, %v491
  %v493 = vlaneseq
  %v494 = vshrl.u32 %v493, 7
  %v495 = vsub.s32 2, %v494
  %v496 = vrot.slane %v450, %v495
  %v497 = vlaneseq
  %v498 = vshrl.u32 %v497, 7
  %v499 = vsub.s32 3, %v498
  %v500 = vrot.slane %v450, %v499
  %vm513 = vcmask 195584
  %v515 = vsel %vm513, %v25, 0
  %v518 = vsel %vm513, %v28, 0
  %520 = vmatprep.subr.mxu0 %v30
  %521 = vmatpush1.msra.mxu0 %v29
  %522 = vmatprep.subr.mxu0 %v42
  %523 = vmatpush1.msra.mxu0 %v41
  %524 = vmatprep.subr.mxu0 %v54
  %525 = vmatpush1.msra.mxu0 %v53
  %526 = vmatprep.subr.mxu0 %v66
  %527 = vmatpush1.msra.mxu0 %v65
  %528 = vmatprep.subr.mxu0 %v78
  %529 = vmatpush1.msra.mxu0 %v77
  %530 = vmatprep.subr.mxu0 %v90
  %531 = vmatpush1.msra.mxu0 %v89
  %532 = vmatprep.subr.mxu0 %v102
  %533 = vmatpush1.msra.mxu0 %v101
  %534 = vmatprep.subr.mxu0 %v114
  %535 = vmatpush1.msra.mxu0 %v113
  %536 = vmatprep.subr.mxu0 %v126
  %537 = vmatpush1.msra.mxu0 %v125
  %538 = vmatprep.subr.mxu0 %v138
  %539 = vmatpush1.msra.mxu0 %v137
  %540 = vmatprep.subr.mxu0 %v150
  %541 = vmatpush1.msra.mxu0 %v149
  %542 = vmatprep.subr.mxu0 %v162
  %543 = vmatpush1.msra.mxu0 %v161
  %544 = vmatprep.subr.mxu0 %v174
  %545 = vmatpush1.msra.mxu0 %v173
  %546 = vmatprep.subr.mxu0 %v186
  %547 = vmatpush1.msra.mxu0 %v185
  %548 = vmatprep.subr.mxu0 %v198
  %549 = vmatpush1.msra.mxu0 %v197
  %550 = vmatprep.subr.mxu0 %v210
  %551 = vmatpush1.msra.mxu0 %v209
  %552 = vmatprep.subr.mxu0 %v222
  %553 = vmatpush1.msra.mxu0 %v221
  %554 = vmatprep.subr.mxu0 %v234
  %555 = vmatpush1.msra.mxu0 %v233
  %556 = vmatprep.subr.mxu0 %v246
  %557 = vmatpush1.msra.mxu0 %v245
  %558 = vmatprep.subr.mxu0 %v258
  %559 = vmatpush1.msra.mxu0 %v257
  %560 = vmatprep.subr.mxu0 %v270
  %561 = vmatpush1.msra.mxu0 %v269
  %562 = vmatprep.subr.mxu0 %v282
  %563 = vmatpush1.msra.mxu0 %v281
  %564 = vmatprep.subr.mxu0 %v294
  %565 = vmatpush1.msra.mxu0 %v293
  %566 = vmatprep.subr.mxu0 %v306
  %567 = vmatpush1.msra.mxu0 %v305
  %568 = vmatprep.subr.mxu0 %v318
  %569 = vmatpush1.msra.mxu0 %v317
  %570 = vmatprep.subr.mxu0 %v330
  %571 = vmatpush1.msra.mxu0 %v329
  %572 = vmatprep.subr.mxu0 %v342
  %573 = vmatpush1.msra.mxu0 %v341
  %574 = vmatprep.subr.mxu0 %v354
  %575 = vmatpush1.msra.mxu0 %v353
  %576 = vmatprep.subr.mxu0 %v366
  %577 = vmatpush1.msra.mxu0 %v365
  %578 = vmatprep.subr.mxu0 %v378
  %579 = vmatpush1.msra.mxu0 %v377
  %580 = vmatprep.subr.mxu0 %v390
  %581 = vmatpush1.msra.mxu0 %v389
  %582 = vmatprep.subr.mxu0 %v402
  %583 = vmatpush1.msra.mxu0 %v401
  %584 = vmatprep.mubr.f32.mxu0 %v24
  %585 = vmatmul.mubr.f32.gmra.mrb[0].mxu0 %v23
  %v586 = vpop.f32.mrb[0].mxu0
  %v587 = vadd.f32 %v456, %v586
  %v588 = vpop.f32.mrb[0].mxu0
  %v589 = vadd.f32 %v460, %v588
  %590 = vmatprep.mubr.f32.mxu0 %v27
  %591 = vmatmul.mubr.f32.gmra.mrb[0].mxu0 %v26
  %v592 = vpop.f32.mrb[0].mxu0
  %v593 = vadd.f32 %v456, %v592
  %v594 = vpop.f32.mrb[0].mxu0
  %v595 = vadd.f32 %v460, %v594
  %596 = vdwg.mxu0
  %597 = vmatprep.subr.mxu0 %v414
  %598 = vmatpush1.msra.mxu0 %v413
  %599 = vmatprep.subr.mxu0 %v426
  %600 = vmatpush1.msra.mxu0 %v425
  %601 = vmatprep.subr.mxu0 %v438
  %602 = vmatpush1.msra.mxu0 %v437
  %603 = vmatprep.subr.mxu0 0.0
  %604 = vmatpush1.msra.mxu0 0.0
  %605 = vmatprep.subr.mxu0 0.0
  %606 = vmatpush1.msra.mxu0 0.0
  %607 = vmatprep.subr.mxu0 0.0
  %608 = vmatpush1.msra.mxu0 0.0
  %609 = vmatprep.subr.mxu0 0.0
  %610 = vmatpush1.msra.mxu0 0.0
  %611 = vmatprep.subr.mxu0 0.0
  %612 = vmatpush1.msra.mxu0 0.0
  %613 = vmatprep.subr.mxu0 0.0
  %614 = vmatpush1.msra.mxu0 0.0
  %615 = vmatprep.subr.mxu0 0.0
  %616 = vmatpush1.msra.mxu0 0.0
  %617 = vmatprep.subr.mxu0 0.0
  %618 = vmatpush1.msra.mxu0 0.0
  %619 = vmatprep.subr.mxu0 0.0
  %620 = vmatpush1.msra.mxu0 0.0
  %621 = vmatprep.subr.mxu0 0.0
  %622 = vmatpush1.msra.mxu0 0.0
  %623 = vmatprep.subr.mxu0 0.0
  %624 = vmatpush1.msra.mxu0 0.0
  %625 = vmatprep.subr.mxu0 0.0
  %626 = vmatpush1.msra.mxu0 0.0
  %627 = vmatprep.subr.mxu0 0.0
  %628 = vmatpush1.msra.mxu0 0.0
  %629 = vmatprep.subr.mxu0 0.0
  %630 = vmatpush1.msra.mxu0 0.0
  %631 = vmatprep.subr.mxu0 0.0
  %632 = vmatpush1.msra.mxu0 0.0
  %633 = vmatprep.subr.mxu0 0.0
  %634 = vmatpush1.msra.mxu0 0.0
  %635 = vmatprep.subr.mxu0 0.0
  %636 = vmatpush1.msra.mxu0 0.0
  %637 = vmatprep.subr.mxu0 0.0
  %638 = vmatpush1.msra.mxu0 0.0
  %639 = vmatprep.subr.mxu0 0.0
  %640 = vmatpush1.msra.mxu0 0.0
  %641 = vmatprep.subr.mxu0 0.0
  %642 = vmatpush1.msra.mxu0 0.0
  %643 = vmatprep.subr.mxu0 0.0
  %644 = vmatpush1.msra.mxu0 0.0
  %645 = vmatprep.subr.mxu0 0.0
  %646 = vmatpush1.msra.mxu0 0.0
  %647 = vmatprep.subr.mxu0 0.0
  %648 = vmatpush1.msra.mxu0 0.0
  %649 = vmatprep.subr.mxu0 0.0
  %650 = vmatpush1.msra.mxu0 0.0
  %651 = vmatprep.subr.mxu0 0.0
  %652 = vmatpush1.msra.mxu0 0.0
  %653 = vmatprep.subr.mxu0 0.0
  %654 = vmatpush1.msra.mxu0 0.0
  %655 = vmatprep.subr.mxu0 0.0
  %656 = vmatpush1.msra.mxu0 0.0
  %657 = vmatprep.subr.mxu0 0.0
  %658 = vmatpush1.msra.mxu0 0.0
  %659 = vmatprep.subr.mxu0 0.0
  %660 = vmatpush1.msra.mxu0 0.0
  %661 = vmatprep.mubr.f32.mxu0 0.0
  %662 = vmatmul.mubr.f32.gmra.mrb[0].mxu0 %v515
  %v663 = vpop.f32.mrb[0].mxu0
  %v664 = vadd.f32 %v587, %v663
  %v665 = vpop.f32.mrb[0].mxu0
  %v666 = vadd.f32 %v589, %v665
  %667 = vmatprep.mubr.f32.mxu0 0.0
  %668 = vmatmul.mubr.f32.gmra.mrb[0].mxu0 %v518
  %v669 = vpop.f32.mrb[0].mxu0
  %v670 = vadd.f32 %v593, %v669
  %v671 = vpop.f32.mrb[0].mxu0
  %v672 = vadd.f32 %v595, %v671
  %673 = vdwg.mxu0
  %674 = vmatprep.subr.mxu0 %v32
  %675 = vmatpush1.msra.mxu0 %v31
  %676 = vmatprep.subr.mxu0 %v44
  %677 = vmatpush1.msra.mxu0 %v43
  %678 = vmatprep.subr.mxu0 %v56
  %679 = vmatpush1.msra.mxu0 %v55
  %680 = vmatprep.subr.mxu0 %v68
  %681 = vmatpush1.msra.mxu0 %v67
  %682 = vmatprep.subr.mxu0 %v80
  %683 = vmatpush1.msra.mxu0 %v79
  %684 = vmatprep.subr.mxu0 %v92
  %685 = vmatpush1.msra.mxu0 %v91
  %686 = vmatprep.subr.mxu0 %v104
  %687 = vmatpush1.msra.mxu0 %v103
  %688 = vmatprep.subr.mxu0 %v116
  %689 = vmatpush1.msra.mxu0 %v115
  %690 = vmatprep.subr.mxu0 %v128
  %691 = vmatpush1.msra.mxu0 %v127
  %692 = vmatprep.subr.mxu0 %v140
  %693 = vmatpush1.msra.mxu0 %v139
  %694 = vmatprep.subr.mxu0 %v152
  %695 = vmatpush1.msra.mxu0 %v151
  %696 = vmatprep.subr.mxu0 %v164
  %697 = vmatpush1.msra.mxu0 %v163
  %698 = vmatprep.subr.mxu0 %v176
  %699 = vmatpush1.msra.mxu0 %v175
  %700 = vmatprep.subr.mxu0 %v188
  %701 = vmatpush1.msra.mxu0 %v187
  %702 = vmatprep.subr.mxu0 %v200
  %703 = vmatpush1.msra.mxu0 %v199
  %704 = vmatprep.subr.mxu0 %v212
  %705 = vmatpush1.msra.mxu0 %v211
  %706 = vmatprep.subr.mxu0 %v224
  %707 = vmatpush1.msra.mxu0 %v223
  %708 = vmatprep.subr.mxu0 %v236
  %709 = vmatpush1.msra.mxu0 %v235
  %710 = vmatprep.subr.mxu0 %v248
  %711 = vmatpush1.msra.mxu0 %v247
  %712 = vmatprep.subr.mxu0 %v260
  %713 = vmatpush1.msra.mxu0 %v259
  %714 = vmatprep.subr.mxu0 %v272
  %715 = vmatpush1.msra.mxu0 %v271
  %716 = vmatprep.subr.mxu0 %v284
  %717 = vmatpush1.msra.mxu0 %v283
  %718 = vmatprep.subr.mxu0 %v296
  %719 = vmatpush1.msra.mxu0 %v295
  %720 = vmatprep.subr.mxu0 %v308
  %721 = vmatpush1.msra.mxu0 %v307
  %722 = vmatprep.subr.mxu0 %v320
  %723 = vmatpush1.msra.mxu0 %v319
  %724 = vmatprep.subr.mxu0 %v332
  %725 = vmatpush1.msra.mxu0 %v331
  %726 = vmatprep.subr.mxu0 %v344
  %727 = vmatpush1.msra.mxu0 %v343
  %728 = vmatprep.subr.mxu0 %v356
  %729 = vmatpush1.msra.mxu0 %v355
  %730 = vmatprep.subr.mxu0 %v368
  %731 = vmatpush1.msra.mxu0 %v367
  %732 = vmatprep.subr.mxu0 %v380
  %733 = vmatpush1.msra.mxu0 %v379
  %734 = vmatprep.subr.mxu0 %v392
  %735 = vmatpush1.msra.mxu0 %v391
  %736 = vmatprep.subr.mxu0 %v404
  %737 = vmatpush1.msra.mxu0 %v403
  %738 = vmatprep.mubr.f32.mxu0 %v24
  %739 = vmatmul.mubr.f32.gmra.mrb[0].mxu0 %v23
  %v740 = vpop.f32.mrb[0].mxu0
  %v741 = vadd.f32 %v464, %v740
  %v742 = vpop.f32.mrb[0].mxu0
  %v743 = vadd.f32 %v468, %v742
  %744 = vmatprep.mubr.f32.mxu0 %v27
  %745 = vmatmul.mubr.f32.gmra.mrb[0].mxu0 %v26
  %v746 = vpop.f32.mrb[0].mxu0
  %v747 = vadd.f32 %v464, %v746
  %v748 = vpop.f32.mrb[0].mxu0
  %v749 = vadd.f32 %v468, %v748
  %750 = vdwg.mxu0
  %751 = vmatprep.subr.mxu0 %v416
  %752 = vmatpush1.msra.mxu0 %v415
  %753 = vmatprep.subr.mxu0 %v428
  %754 = vmatpush1.msra.mxu0 %v427
  %755 = vmatprep.subr.mxu0 %v440
  %756 = vmatpush1.msra.mxu0 %v439
  %757 = vmatprep.subr.mxu0 0.0
  %758 = vmatpush1.msra.mxu0 0.0
  %759 = vmatprep.subr.mxu0 0.0
  %760 = vmatpush1.msra.mxu0 0.0
  %761 = vmatprep.subr.mxu0 0.0
  %762 = vmatpush1.msra.mxu0 0.0
  %763 = vmatprep.subr.mxu0 0.0
  %764 = vmatpush1.msra.mxu0 0.0
  %765 = vmatprep.subr.mxu0 0.0
  %766 = vmatpush1.msra.mxu0 0.0
  %767 = vmatprep.subr.mxu0 0.0
  %768 = vmatpush1.msra.mxu0 0.0
  %769 = vmatprep.subr.mxu0 0.0
  %770 = vmatpush1.msra.mxu0 0.0
  %771 = vmatprep.subr.mxu0 0.0
  %772 = vmatpush1.msra.mxu0 0.0
  %773 = vmatprep.subr.mxu0 0.0
  %774 = vmatpush1.msra.mxu0 0.0
  %775 = vmatprep.subr.mxu0 0.0
  %776 = vmatpush1.msra.mxu0 0.0
  %777 = vmatprep.subr.mxu0 0.0
  %778 = vmatpush1.msra.mxu0 0.0
  %779 = vmatprep.subr.mxu0 0.0
  %780 = vmatpush1.msra.mxu0 0.0
  %781 = vmatprep.subr.mxu0 0.0
  %782 = vmatpush1.msra.mxu0 0.0
  %783 = vmatprep.subr.mxu0 0.0
  %784 = vmatpush1.msra.mxu0 0.0
  %785 = vmatprep.subr.mxu0 0.0
  %786 = vmatpush1.msra.mxu0 0.0
  %787 = vmatprep.subr.mxu0 0.0
  %788 = vmatpush1.msra.mxu0 0.0
  %789 = vmatprep.subr.mxu0 0.0
  %790 = vmatpush1.msra.mxu0 0.0
  %791 = vmatprep.subr.mxu0 0.0
  %792 = vmatpush1.msra.mxu0 0.0
  %793 = vmatprep.subr.mxu0 0.0
  %794 = vmatpush1.msra.mxu0 0.0
  %795 = vmatprep.subr.mxu0 0.0
  %796 = vmatpush1.msra.mxu0 0.0
  %797 = vmatprep.subr.mxu0 0.0
  %798 = vmatpush1.msra.mxu0 0.0
  %799 = vmatprep.subr.mxu0 0.0
  %800 = vmatpush1.msra.mxu0 0.0
  %801 = vmatprep.subr.mxu0 0.0
  %802 = vmatpush1.msra.mxu0 0.0
  %803 = vmatprep.subr.mxu0 0.0
  %804 = vmatpush1.msra.mxu0 0.0
  %805 = vmatprep.subr.mxu0 0.0
  %806 = vmatpush1.msra.mxu0 0.0
  %807 = vmatprep.subr.mxu0 0.0
  %808 = vmatpush1.msra.mxu0 0.0
  %809 = vmatprep.subr.mxu0 0.0
  %810 = vmatpush1.msra.mxu0 0.0
  %811 = vmatprep.subr.mxu0 0.0
  %812 = vmatpush1.msra.mxu0 0.0
  %813 = vmatprep.subr.mxu0 0.0
  %814 = vmatpush1.msra.mxu0 0.0
  %815 = vmatprep.mubr.f32.mxu0 0.0
  %816 = vmatmul.mubr.f32.gmra.mrb[0].mxu0 %v515
  %v817 = vpop.f32.mrb[0].mxu0
  %v818 = vadd.f32 %v741, %v817
  %v819 = vpop.f32.mrb[0].mxu0
  %v820 = vadd.f32 %v743, %v819
  %821 = vmatprep.mubr.f32.mxu0 0.0
  %822 = vmatmul.mubr.f32.gmra.mrb[0].mxu0 %v518
  %v823 = vpop.f32.mrb[0].mxu0
  %v824 = vadd.f32 %v747, %v823
  %v825 = vpop.f32.mrb[0].mxu0
  %v826 = vadd.f32 %v749, %v825
  %827 = vdwg.mxu0
  %828 = vmatprep.subr.mxu0 %v34
  %829 = vmatpush1.msra.mxu0 %v33
  %830 = vmatprep.subr.mxu0 %v46
  %831 = vmatpush1.msra.mxu0 %v45
  %832 = vmatprep.subr.mxu0 %v58
  %833 = vmatpush1.msra.mxu0 %v57
  %834 = vmatprep.subr.mxu0 %v70
  %835 = vmatpush1.msra.mxu0 %v69
  %836 = vmatprep.subr.mxu0 %v82
  %837 = vmatpush1.msra.mxu0 %v81
  %838 = vmatprep.subr.mxu0 %v94
  %839 = vmatpush1.msra.mxu0 %v93
  %840 = vmatprep.subr.mxu0 %v106
  %841 = vmatpush1.msra.mxu0 %v105
  %842 = vmatprep.subr.mxu0 %v118
  %843 = vmatpush1.msra.mxu0 %v117
  %844 = vmatprep.subr.mxu0 %v130
  %845 = vmatpush1.msra.mxu0 %v129
  %846 = vmatprep.subr.mxu0 %v142
  %847 = vmatpush1.msra.mxu0 %v141
  %848 = vmatprep.subr.mxu0 %v154
  %849 = vmatpush1.msra.mxu0 %v153
  %850 = vmatprep.subr.mxu0 %v166
  %851 = vmatpush1.msra.mxu0 %v165
  %852 = vmatprep.subr.mxu0 %v178
  %853 = vmatpush1.msra.mxu0 %v177
  %854 = vmatprep.subr.mxu0 %v190
  %855 = vmatpush1.msra.mxu0 %v189
  %856 = vmatprep.subr.mxu0 %v202
  %857 = vmatpush1.msra.mxu0 %v201
  %858 = vmatprep.subr.mxu0 %v214
  %859 = vmatpush1.msra.mxu0 %v213
  %860 = vmatprep.subr.mxu0 %v226
  %861 = vmatpush1.msra.mxu0 %v225
  %862 = vmatprep.subr.mxu0 %v238
  %863 = vmatpush1.msra.mxu0 %v237
  %864 = vmatprep.subr.mxu0 %v250
  %865 = vmatpush1.msra.mxu0 %v249
  %866 = vmatprep.subr.mxu0 %v262
  %867 = vmatpush1.msra.mxu0 %v261
  %868 = vmatprep.subr.mxu0 %v274
  %869 = vmatpush1.msra.mxu0 %v273
  %870 = vmatprep.subr.mxu0 %v286
  %871 = vmatpush1.msra.mxu0 %v285
  %872 = vmatprep.subr.mxu0 %v298
  %873 = vmatpush1.msra.mxu0 %v297
  %874 = vmatprep.subr.mxu0 %v310
  %875 = vmatpush1.msra.mxu0 %v309
  %876 = vmatprep.subr.mxu0 %v322
  %877 = vmatpush1.msra.mxu0 %v321
  %878 = vmatprep.subr.mxu0 %v334
  %879 = vmatpush1.msra.mxu0 %v333
  %880 = vmatprep.subr.mxu0 %v346
  %881 = vmatpush1.msra.mxu0 %v345
  %882 = vmatprep.subr.mxu0 %v358
  %883 = vmatpush1.msra.mxu0 %v357
  %884 = vmatprep.subr.mxu0 %v370
  %885 = vmatpush1.msra.mxu0 %v369
  %886 = vmatprep.subr.mxu0 %v382
  %887 = vmatpush1.msra.mxu0 %v381
  %888 = vmatprep.subr.mxu0 %v394
  %889 = vmatpush1.msra.mxu0 %v393
  %890 = vmatprep.subr.mxu0 %v406
  %891 = vmatpush1.msra.mxu0 %v405
  %892 = vmatprep.mubr.f32.mxu0 %v24
  %893 = vmatmul.mubr.f32.gmra.mrb[0].mxu0 %v23
  %v894 = vpop.f32.mrb[0].mxu0
  %v895 = vadd.f32 %v472, %v894
  %v896 = vpop.f32.mrb[0].mxu0
  %v897 = vadd.f32 %v476, %v896
  %898 = vmatprep.mubr.f32.mxu0 %v27
  %899 = vmatmul.mubr.f32.gmra.mrb[0].mxu0 %v26
  %v900 = vpop.f32.mrb[0].mxu0
  %v901 = vadd.f32 %v472, %v900
  %v902 = vpop.f32.mrb[0].mxu0
  %v903 = vadd.f32 %v476, %v902
  %904 = vdwg.mxu0
  %905 = vmatprep.subr.mxu0 %v418
  %906 = vmatpush1.msra.mxu0 %v417
  %907 = vmatprep.subr.mxu0 %v430
  %908 = vmatpush1.msra.mxu0 %v429
  %909 = vmatprep.subr.mxu0 %v442
  %910 = vmatpush1.msra.mxu0 %v441
  %911 = vmatprep.subr.mxu0 0.0
  %912 = vmatpush1.msra.mxu0 0.0
  %913 = vmatprep.subr.mxu0 0.0
  %914 = vmatpush1.msra.mxu0 0.0
  %915 = vmatprep.subr.mxu0 0.0
  %916 = vmatpush1.msra.mxu0 0.0
  %917 = vmatprep.subr.mxu0 0.0
  %918 = vmatpush1.msra.mxu0 0.0
  %919 = vmatprep.subr.mxu0 0.0
  %920 = vmatpush1.msra.mxu0 0.0
  %921 = vmatprep.subr.mxu0 0.0
  %922 = vmatpush1.msra.mxu0 0.0
  %923 = vmatprep.subr.mxu0 0.0
  %924 = vmatpush1.msra.mxu0 0.0
  %925 = vmatprep.subr.mxu0 0.0
  %926 = vmatpush1.msra.mxu0 0.0
  %927 = vmatprep.subr.mxu0 0.0
  %928 = vmatpush1.msra.mxu0 0.0
  %929 = vmatprep.subr.mxu0 0.0
  %930 = vmatpush1.msra.mxu0 0.0
  %931 = vmatprep.subr.mxu0 0.0
  %932 = vmatpush1.msra.mxu0 0.0
  %933 = vmatprep.subr.mxu0 0.0
  %934 = vmatpush1.msra.mxu0 0.0
  %935 = vmatprep.subr.mxu0 0.0
  %936 = vmatpush1.msra.mxu0 0.0
  %937 = vmatprep.subr.mxu0 0.0
  %938 = vmatpush1.msra.mxu0 0.0
  %939 = vmatprep.subr.mxu0 0.0
  %940 = vmatpush1.msra.mxu0 0.0
  %941 = vmatprep.subr.mxu0 0.0
  %942 = vmatpush1.msra.mxu0 0.0
  %943 = vmatprep.subr.mxu0 0.0
  %944 = vmatpush1.msra.mxu0 0.0
  %945 = vmatprep.subr.mxu0 0.0
  %946 = vmatpush1.msra.mxu0 0.0
  %947 = vmatprep.subr.mxu0 0.0
  %948 = vmatpush1.msra.mxu0 0.0
  %949 = vmatprep.subr.mxu0 0.0
  %950 = vmatpush1.msra.mxu0 0.0
  %951 = vmatprep.subr.mxu0 0.0
  %952 = vmatpush1.msra.mxu0 0.0
  %953 = vmatprep.subr.mxu0 0.0
  %954 = vmatpush1.msra.mxu0 0.0
  %955 = vmatprep.subr.mxu0 0.0
  %956 = vmatpush1.msra.mxu0 0.0
  %957 = vmatprep.subr.mxu0 0.0
  %958 = vmatpush1.msra.mxu0 0.0
  %959 = vmatprep.subr.mxu0 0.0
  %960 = vmatpush1.msra.mxu0 0.0
  %961 = vmatprep.subr.mxu0 0.0
  %962 = vmatpush1.msra.mxu0 0.0
  %963 = vmatprep.subr.mxu0 0.0
  %964 = vmatpush1.msra.mxu0 0.0
  %965 = vmatprep.subr.mxu0 0.0
  %966 = vmatpush1.msra.mxu0 0.0
  %967 = vmatprep.subr.mxu0 0.0
  %968 = vmatpush1.msra.mxu0 0.0
  %969 = vmatprep.mubr.f32.mxu0 0.0
  %970 = vmatmul.mubr.f32.gmra.mrb[0].mxu0 %v515
  %v971 = vpop.f32.mrb[0].mxu0
  %v972 = vadd.f32 %v895, %v971
  %v973 = vpop.f32.mrb[0].mxu0
  %v974 = vadd.f32 %v897, %v973
  %975 = vmatprep.mubr.f32.mxu0 0.0
  %976 = vmatmul.mubr.f32.gmra.mrb[0].mxu0 %v518
  %v977 = vpop.f32.mrb[0].mxu0
  %v978 = vadd.f32 %v901, %v977
  %v979 = vpop.f32.mrb[0].mxu0
  %v980 = vadd.f32 %v903, %v979
  %981 = vdwg.mxu0
  %982 = vmatprep.subr.mxu0 %v36
  %983 = vmatpush1.msra.mxu0 %v35
  %984 = vmatprep.subr.mxu0 %v48
  %985 = vmatpush1.msra.mxu0 %v47
  %986 = vmatprep.subr.mxu0 %v60
  %987 = vmatpush1.msra.mxu0 %v59
  %988 = vmatprep.subr.mxu0 %v72
  %989 = vmatpush1.msra.mxu0 %v71
  %990 = vmatprep.subr.mxu0 %v84
  %991 = vmatpush1.msra.mxu0 %v83
  %992 = vmatprep.subr.mxu0 %v96
  %993 = vmatpush1.msra.mxu0 %v95
  %994 = vmatprep.subr.mxu0 %v108
  %995 = vmatpush1.msra.mxu0 %v107
  %996 = vmatprep.subr.mxu0 %v120
  %997 = vmatpush1.msra.mxu0 %v119
  %998 = vmatprep.subr.mxu0 %v132
  %999 = vmatpush1.msra.mxu0 %v131
  %1000 = vmatprep.subr.mxu0 %v144
  %1001 = vmatpush1.msra.mxu0 %v143
  %1002 = vmatprep.subr.mxu0 %v156
  %1003 = vmatpush1.msra.mxu0 %v155
  %1004 = vmatprep.subr.mxu0 %v168
  %1005 = vmatpush1.msra.mxu0 %v167
  %1006 = vmatprep.subr.mxu0 %v180
  %1007 = vmatpush1.msra.mxu0 %v179
  %1008 = vmatprep.subr.mxu0 %v192
  %1009 = vmatpush1.msra.mxu0 %v191
  %1010 = vmatprep.subr.mxu0 %v204
  %1011 = vmatpush1.msra.mxu0 %v203
  %1012 = vmatprep.subr.mxu0 %v216
  %1013 = vmatpush1.msra.mxu0 %v215
  %1014 = vmatprep.subr.mxu0 %v228
  %1015 = vmatpush1.msra.mxu0 %v227
  %1016 = vmatprep.subr.mxu0 %v240
  %1017 = vmatpush1.msra.mxu0 %v239
  %1018 = vmatprep.subr.mxu0 %v252
  %1019 = vmatpush1.msra.mxu0 %v251
  %1020 = vmatprep.subr.mxu0 %v264
  %1021 = vmatpush1.msra.mxu0 %v263
  %1022 = vmatprep.subr.mxu0 %v276
  %1023 = vmatpush1.msra.mxu0 %v275
  %1024 = vmatprep.subr.mxu0 %v288
  %1025 = vmatpush1.msra.mxu0 %v287
  %1026 = vmatprep.subr.mxu0 %v300
  %1027 = vmatpush1.msra.mxu0 %v299
  %1028 = vmatprep.subr.mxu0 %v312
  %1029 = vmatpush1.msra.mxu0 %v311
  %1030 = vmatprep.subr.mxu0 %v324
  %1031 = vmatpush1.msra.mxu0 %v323
  %1032 = vmatprep.subr.mxu0 %v336
  %1033 = vmatpush1.msra.mxu0 %v335
  %1034 = vmatprep.subr.mxu0 %v348
  %1035 = vmatpush1.msra.mxu0 %v347
  %1036 = vmatprep.subr.mxu0 %v360
  %1037 = vmatpush1.msra.mxu0 %v359
  %1038 = vmatprep.subr.mxu0 %v372
  %1039 = vmatpush1.msra.mxu0 %v371
  %1040 = vmatprep.subr.mxu0 %v384
  %1041 = vmatpush1.msra.mxu0 %v383
  %1042 = vmatprep.subr.mxu0 %v396
  %1043 = vmatpush1.msra.mxu0 %v395
  %1044 = vmatprep.subr.mxu0 %v408
  %1045 = vmatpush1.msra.mxu0 %v407
  %1046 = vmatprep.mubr.f32.mxu0 %v24
  %1047 = vmatmul.mubr.f32.gmra.mrb[0].mxu0 %v23
  %v1048 = vpop.f32.mrb[0].mxu0
  %v1049 = vadd.f32 %v480, %v1048
  %v1050 = vpop.f32.mrb[0].mxu0
  %v1051 = vadd.f32 %v484, %v1050
  %1052 = vmatprep.mubr.f32.mxu0 %v27
  %1053 = vmatmul.mubr.f32.gmra.mrb[0].mxu0 %v26
  %v1054 = vpop.f32.mrb[0].mxu0
  %v1055 = vadd.f32 %v480, %v1054
  %v1056 = vpop.f32.mrb[0].mxu0
  %v1057 = vadd.f32 %v484, %v1056
  %1058 = vdwg.mxu0
  %1059 = vmatprep.subr.mxu0 %v420
  %1060 = vmatpush1.msra.mxu0 %v419
  %1061 = vmatprep.subr.mxu0 %v432
  %1062 = vmatpush1.msra.mxu0 %v431
  %1063 = vmatprep.subr.mxu0 %v444
  %1064 = vmatpush1.msra.mxu0 %v443
  %1065 = vmatprep.subr.mxu0 0.0
  %1066 = vmatpush1.msra.mxu0 0.0
  %1067 = vmatprep.subr.mxu0 0.0
  %1068 = vmatpush1.msra.mxu0 0.0
  %1069 = vmatprep.subr.mxu0 0.0
  %1070 = vmatpush1.msra.mxu0 0.0
  %1071 = vmatprep.subr.mxu0 0.0
  %1072 = vmatpush1.msra.mxu0 0.0
  %1073 = vmatprep.subr.mxu0 0.0
  %1074 = vmatpush1.msra.mxu0 0.0
  %1075 = vmatprep.subr.mxu0 0.0
  %1076 = vmatpush1.msra.mxu0 0.0
  %1077 = vmatprep.subr.mxu0 0.0
  %1078 = vmatpush1.msra.mxu0 0.0
  %1079 = vmatprep.subr.mxu0 0.0
  %1080 = vmatpush1.msra.mxu0 0.0
  %1081 = vmatprep.subr.mxu0 0.0
  %1082 = vmatpush1.msra.mxu0 0.0
  %1083 = vmatprep.subr.mxu0 0.0
  %1084 = vmatpush1.msra.mxu0 0.0
  %1085 = vmatprep.subr.mxu0 0.0
  %1086 = vmatpush1.msra.mxu0 0.0
  %1087 = vmatprep.subr.mxu0 0.0
  %1088 = vmatpush1.msra.mxu0 0.0
  %1089 = vmatprep.subr.mxu0 0.0
  %1090 = vmatpush1.msra.mxu0 0.0
  %1091 = vmatprep.subr.mxu0 0.0
  %1092 = vmatpush1.msra.mxu0 0.0
  %1093 = vmatprep.subr.mxu0 0.0
  %1094 = vmatpush1.msra.mxu0 0.0
  %1095 = vmatprep.subr.mxu0 0.0
  %1096 = vmatpush1.msra.mxu0 0.0
  %1097 = vmatprep.subr.mxu0 0.0
  %1098 = vmatpush1.msra.mxu0 0.0
  %1099 = vmatprep.subr.mxu0 0.0
  %1100 = vmatpush1.msra.mxu0 0.0
  %1101 = vmatprep.subr.mxu0 0.0
  %1102 = vmatpush1.msra.mxu0 0.0
  %1103 = vmatprep.subr.mxu0 0.0
  %1104 = vmatpush1.msra.mxu0 0.0
  %1105 = vmatprep.subr.mxu0 0.0
  %1106 = vmatpush1.msra.mxu0 0.0
  %1107 = vmatprep.subr.mxu0 0.0
  %1108 = vmatpush1.msra.mxu0 0.0
  %1109 = vmatprep.subr.mxu0 0.0
  %1110 = vmatpush1.msra.mxu0 0.0
  %1111 = vmatprep.subr.mxu0 0.0
  %1112 = vmatpush1.msra.mxu0 0.0
  %1113 = vmatprep.subr.mxu0 0.0
  %1114 = vmatpush1.msra.mxu0 0.0
  %1115 = vmatprep.subr.mxu0 0.0
  %1116 = vmatpush1.msra.mxu0 0.0
  %1117 = vmatprep.subr.mxu0 0.0
  %1118 = vmatpush1.msra.mxu0 0.0
  %1119 = vmatprep.subr.mxu0 0.0
  %1120 = vmatpush1.msra.mxu0 0.0
  %1121 = vmatprep.subr.mxu0 0.0
  %1122 = vmatpush1.msra.mxu0 0.0
  %1123 = vmatprep.mubr.f32.mxu0 0.0
  %1124 = vmatmul.mubr.f32.gmra.mrb[0].mxu0 %v515
  %v1125 = vpop.f32.mrb[0].mxu0
  %v1126 = vadd.f32 %v1049, %v1125
  %v1127 = vpop.f32.mrb[0].mxu0
  %v1128 = vadd.f32 %v1051, %v1127
  %1129 = vmatprep.mubr.f32.mxu0 0.0
  %1130 = vmatmul.mubr.f32.gmra.mrb[0].mxu0 %v518
  %v1131 = vpop.f32.mrb[0].mxu0
  %v1132 = vadd.f32 %v1055, %v1131
  %v1133 = vpop.f32.mrb[0].mxu0
  %v1134 = vadd.f32 %v1057, %v1133
  %1135 = vdwg.mxu0
  %1136 = vmatprep.subr.mxu0 %v38
  %1137 = vmatpush1.msra.mxu0 %v37
  %1138 = vmatprep.subr.mxu0 %v50
  %1139 = vmatpush1.msra.mxu0 %v49
  %1140 = vmatprep.subr.mxu0 %v62
  %1141 = vmatpush1.msra.mxu0 %v61
  %1142 = vmatprep.subr.mxu0 %v74
  %1143 = vmatpush1.msra.mxu0 %v73
  %1144 = vmatprep.subr.mxu0 %v86
  %1145 = vmatpush1.msra.mxu0 %v85
  %1146 = vmatprep.subr.mxu0 %v98
  %1147 = vmatpush1.msra.mxu0 %v97
  %1148 = vmatprep.subr.mxu0 %v110
  %1149 = vmatpush1.msra.mxu0 %v109
  %1150 = vmatprep.subr.mxu0 %v122
  %1151 = vmatpush1.msra.mxu0 %v121
  %1152 = vmatprep.subr.mxu0 %v134
  %1153 = vmatpush1.msra.mxu0 %v133
  %1154 = vmatprep.subr.mxu0 %v146
  %1155 = vmatpush1.msra.mxu0 %v145
  %1156 = vmatprep.subr.mxu0 %v158
  %1157 = vmatpush1.msra.mxu0 %v157
  %1158 = vmatprep.subr.mxu0 %v170
  %1159 = vmatpush1.msra.mxu0 %v169
  %1160 = vmatprep.subr.mxu0 %v182
  %1161 = vmatpush1.msra.mxu0 %v181
  %1162 = vmatprep.subr.mxu0 %v194
  %1163 = vmatpush1.msra.mxu0 %v193
  %1164 = vmatprep.subr.mxu0 %v206
  %1165 = vmatpush1.msra.mxu0 %v205
  %1166 = vmatprep.subr.mxu0 %v218
  %1167 = vmatpush1.msra.mxu0 %v217
  %1168 = vmatprep.subr.mxu0 %v230
  %1169 = vmatpush1.msra.mxu0 %v229
  %1170 = vmatprep.subr.mxu0 %v242
  %1171 = vmatpush1.msra.mxu0 %v241
  %1172 = vmatprep.subr.mxu0 %v254
  %1173 = vmatpush1.msra.mxu0 %v253
  %1174 = vmatprep.subr.mxu0 %v266
  %1175 = vmatpush1.msra.mxu0 %v265
  %1176 = vmatprep.subr.mxu0 %v278
  %1177 = vmatpush1.msra.mxu0 %v277
  %1178 = vmatprep.subr.mxu0 %v290
  %1179 = vmatpush1.msra.mxu0 %v289
  %1180 = vmatprep.subr.mxu0 %v302
  %1181 = vmatpush1.msra.mxu0 %v301
  %1182 = vmatprep.subr.mxu0 %v314
  %1183 = vmatpush1.msra.mxu0 %v313
  %1184 = vmatprep.subr.mxu0 %v326
  %1185 = vmatpush1.msra.mxu0 %v325
  %1186 = vmatprep.subr.mxu0 %v338
  %1187 = vmatpush1.msra.mxu0 %v337
  %1188 = vmatprep.subr.mxu0 %v350
  %1189 = vmatpush1.msra.mxu0 %v349
  %1190 = vmatprep.subr.mxu0 %v362
  %1191 = vmatpush1.msra.mxu0 %v361
  %1192 = vmatprep.subr.mxu0 %v374
  %1193 = vmatpush1.msra.mxu0 %v373
  %1194 = vmatprep.subr.mxu0 %v386
  %1195 = vmatpush1.msra.mxu0 %v385
  %1196 = vmatprep.subr.mxu0 %v398
  %1197 = vmatpush1.msra.mxu0 %v397
  %1198 = vmatprep.subr.mxu0 %v410
  %1199 = vmatpush1.msra.mxu0 %v409
  %1200 = vmatprep.mubr.f32.mxu0 %v24
  %1201 = vmatmul.mubr.f32.gmra.mrb[0].mxu0 %v23
  %v1202 = vpop.f32.mrb[0].mxu0
  %v1203 = vadd.f32 %v488, %v1202
  %v1204 = vpop.f32.mrb[0].mxu0
  %v1205 = vadd.f32 %v492, %v1204
  %1206 = vmatprep.mubr.f32.mxu0 %v27
  %1207 = vmatmul.mubr.f32.gmra.mrb[0].mxu0 %v26
  %v1208 = vpop.f32.mrb[0].mxu0
  %v1209 = vadd.f32 %v488, %v1208
  %v1210 = vpop.f32.mrb[0].mxu0
  %v1211 = vadd.f32 %v492, %v1210
  %1212 = vdwg.mxu0
  %1213 = vmatprep.subr.mxu0 %v422
  %1214 = vmatpush1.msra.mxu0 %v421
  %1215 = vmatprep.subr.mxu0 %v434
  %1216 = vmatpush1.msra.mxu0 %v433
  %1217 = vmatprep.subr.mxu0 %v446
  %1218 = vmatpush1.msra.mxu0 %v445
  %1219 = vmatprep.subr.mxu0 0.0
  %1220 = vmatpush1.msra.mxu0 0.0
  %1221 = vmatprep.subr.mxu0 0.0
  %1222 = vmatpush1.msra.mxu0 0.0
  %1223 = vmatprep.subr.mxu0 0.0
  %1224 = vmatpush1.msra.mxu0 0.0
  %1225 = vmatprep.subr.mxu0 0.0
  %1226 = vmatpush1.msra.mxu0 0.0
  %1227 = vmatprep.subr.mxu0 0.0
  %1228 = vmatpush1.msra.mxu0 0.0
  %1229 = vmatprep.subr.mxu0 0.0
  %1230 = vmatpush1.msra.mxu0 0.0
  %1231 = vmatprep.subr.mxu0 0.0
  %1232 = vmatpush1.msra.mxu0 0.0
  %1233 = vmatprep.subr.mxu0 0.0
  %1234 = vmatpush1.msra.mxu0 0.0
  %1235 = vmatprep.subr.mxu0 0.0
  %1236 = vmatpush1.msra.mxu0 0.0
  %1237 = vmatprep.subr.mxu0 0.0
  %1238 = vmatpush1.msra.mxu0 0.0
  %1239 = vmatprep.subr.mxu0 0.0
  %1240 = vmatpush1.msra.mxu0 0.0
  %1241 = vmatprep.subr.mxu0 0.0
  %1242 = vmatpush1.msra.mxu0 0.0
  %1243 = vmatprep.subr.mxu0 0.0
  %1244 = vmatpush1.msra.mxu0 0.0
  %1245 = vmatprep.subr.mxu0 0.0
  %1246 = vmatpush1.msra.mxu0 0.0
  %1247 = vmatprep.subr.mxu0 0.0
  %1248 = vmatpush1.msra.mxu0 0.0
  %1249 = vmatprep.subr.mxu0 0.0
  %1250 = vmatpush1.msra.mxu0 0.0
  %1251 = vmatprep.subr.mxu0 0.0
  %1252 = vmatpush1.msra.mxu0 0.0
  %1253 = vmatprep.subr.mxu0 0.0
  %1254 = vmatpush1.msra.mxu0 0.0
  %1255 = vmatprep.subr.mxu0 0.0
  %1256 = vmatpush1.msra.mxu0 0.0
  %1257 = vmatprep.subr.mxu0 0.0
  %1258 = vmatpush1.msra.mxu0 0.0
  %1259 = vmatprep.subr.mxu0 0.0
  %1260 = vmatpush1.msra.mxu0 0.0
  %1261 = vmatprep.subr.mxu0 0.0
  %1262 = vmatpush1.msra.mxu0 0.0
  %1263 = vmatprep.subr.mxu0 0.0
  %1264 = vmatpush1.msra.mxu0 0.0
  %1265 = vmatprep.subr.mxu0 0.0
  %1266 = vmatpush1.msra.mxu0 0.0
  %1267 = vmatprep.subr.mxu0 0.0
  %1268 = vmatpush1.msra.mxu0 0.0
  %1269 = vmatprep.subr.mxu0 0.0
  %1270 = vmatpush1.msra.mxu0 0.0
  %1271 = vmatprep.subr.mxu0 0.0
  %1272 = vmatpush1.msra.mxu0 0.0
  %1273 = vmatprep.subr.mxu0 0.0
  %1274 = vmatpush1.msra.mxu0 0.0
  %1275 = vmatprep.subr.mxu0 0.0
  %1276 = vmatpush1.msra.mxu0 0.0
  %1277 = vmatprep.mubr.f32.mxu0 0.0
  %1278 = vmatmul.mubr.f32.gmra.mrb[0].mxu0 %v515
  %v1279 = vpop.f32.mrb[0].mxu0
  %v1280 = vadd.f32 %v1203, %v1279
  %v1281 = vpop.f32.mrb[0].mxu0
  %v1282 = vadd.f32 %v1205, %v1281
  %1283 = vmatprep.mubr.f32.mxu0 0.0
  %1284 = vmatmul.mubr.f32.gmra.mrb[0].mxu0 %v518
  %v1285 = vpop.f32.mrb[0].mxu0
  %v1286 = vadd.f32 %v1209, %v1285
  %v1287 = vpop.f32.mrb[0].mxu0
  %v1288 = vadd.f32 %v1211, %v1287
  %1289 = vdwg.mxu0
  %1290 = vmatprep.subr.mxu0 %v40
  %1291 = vmatpush1.msra.mxu0 %v39
  %1292 = vmatprep.subr.mxu0 %v52
  %1293 = vmatpush1.msra.mxu0 %v51
  %1294 = vmatprep.subr.mxu0 %v64
  %1295 = vmatpush1.msra.mxu0 %v63
  %1296 = vmatprep.subr.mxu0 %v76
  %1297 = vmatpush1.msra.mxu0 %v75
  %1298 = vmatprep.subr.mxu0 %v88
  %1299 = vmatpush1.msra.mxu0 %v87
  %1300 = vmatprep.subr.mxu0 %v100
  %1301 = vmatpush1.msra.mxu0 %v99
  %1302 = vmatprep.subr.mxu0 %v112
  %1303 = vmatpush1.msra.mxu0 %v111
  %1304 = vmatprep.subr.mxu0 %v124
  %1305 = vmatpush1.msra.mxu0 %v123
  %1306 = vmatprep.subr.mxu0 %v136
  %1307 = vmatpush1.msra.mxu0 %v135
  %1308 = vmatprep.subr.mxu0 %v148
  %1309 = vmatpush1.msra.mxu0 %v147
  %1310 = vmatprep.subr.mxu0 %v160
  %1311 = vmatpush1.msra.mxu0 %v159
  %1312 = vmatprep.subr.mxu0 %v172
  %1313 = vmatpush1.msra.mxu0 %v171
  %1314 = vmatprep.subr.mxu0 %v184
  %1315 = vmatpush1.msra.mxu0 %v183
  %1316 = vmatprep.subr.mxu0 %v196
  %1317 = vmatpush1.msra.mxu0 %v195
  %1318 = vmatprep.subr.mxu0 %v208
  %1319 = vmatpush1.msra.mxu0 %v207
  %1320 = vmatprep.subr.mxu0 %v220
  %1321 = vmatpush1.msra.mxu0 %v219
  %1322 = vmatprep.subr.mxu0 %v232
  %1323 = vmatpush1.msra.mxu0 %v231
  %1324 = vmatprep.subr.mxu0 %v244
  %1325 = vmatpush1.msra.mxu0 %v243
  %1326 = vmatprep.subr.mxu0 %v256
  %1327 = vmatpush1.msra.mxu0 %v255
  %1328 = vmatprep.subr.mxu0 %v268
  %1329 = vmatpush1.msra.mxu0 %v267
  %1330 = vmatprep.subr.mxu0 %v280
  %1331 = vmatpush1.msra.mxu0 %v279
  %1332 = vmatprep.subr.mxu0 %v292
  %1333 = vmatpush1.msra.mxu0 %v291
  %1334 = vmatprep.subr.mxu0 %v304
  %1335 = vmatpush1.msra.mxu0 %v303
  %1336 = vmatprep.subr.mxu0 %v316
  %1337 = vmatpush1.msra.mxu0 %v315
  %1338 = vmatprep.subr.mxu0 %v328
  %1339 = vmatpush1.msra.mxu0 %v327
  %1340 = vmatprep.subr.mxu0 %v340
  %1341 = vmatpush1.msra.mxu0 %v339
  %1342 = vmatprep.subr.mxu0 %v352
  %1343 = vmatpush1.msra.mxu0 %v351
  %1344 = vmatprep.subr.mxu0 %v364
  %1345 = vmatpush1.msra.mxu0 %v363
  %1346 = vmatprep.subr.mxu0 %v376
  %1347 = vmatpush1.msra.mxu0 %v375
  %1348 = vmatprep.subr.mxu0 %v388
  %1349 = vmatpush1.msra.mxu0 %v387
  %1350 = vmatprep.subr.mxu0 %v400
  %1351 = vmatpush1.msra.mxu0 %v399
  %1352 = vmatprep.subr.mxu0 %v412
  %1353 = vmatpush1.msra.mxu0 %v411
  %1354 = vmatprep.mubr.f32.mxu0 %v24
  %1355 = vmatmul.mubr.f32.gmra.mrb[0].mxu0 %v23
  %v1356 = vpop.f32.mrb[0].mxu0
  %v1357 = vadd.f32 %v496, %v1356
  %v1358 = vpop.f32.mrb[0].mxu0
  %v1359 = vadd.f32 %v500, %v1358
  %1360 = vmatprep.mubr.f32.mxu0 %v27
  %1361 = vmatmul.mubr.f32.gmra.mrb[0].mxu0 %v26
  %v1362 = vpop.f32.mrb[0].mxu0
  %v1363 = vadd.f32 %v496, %v1362
  %v1364 = vpop.f32.mrb[0].mxu0
  %v1365 = vadd.f32 %v500, %v1364
  %1366 = vdwg.mxu0
  %1367 = vmatprep.subr.mxu0 %v424
  %1368 = vmatpush1.msra.mxu0 %v423
  %1369 = vmatprep.subr.mxu0 %v436
  %1370 = vmatpush1.msra.mxu0 %v435
  %1371 = vmatprep.subr.mxu0 %v448
  %1372 = vmatpush1.msra.mxu0 %v447
  %1373 = vmatprep.subr.mxu0 0.0
  %1374 = vmatpush1.msra.mxu0 0.0
  %1375 = vmatprep.subr.mxu0 0.0
  %1376 = vmatpush1.msra.mxu0 0.0
  %1377 = vmatprep.subr.mxu0 0.0
  %1378 = vmatpush1.msra.mxu0 0.0
  %1379 = vmatprep.subr.mxu0 0.0
  %1380 = vmatpush1.msra.mxu0 0.0
  %1381 = vmatprep.subr.mxu0 0.0
  %1382 = vmatpush1.msra.mxu0 0.0
  %1383 = vmatprep.subr.mxu0 0.0
  %1384 = vmatpush1.msra.mxu0 0.0
  %1385 = vmatprep.subr.mxu0 0.0
  %1386 = vmatpush1.msra.mxu0 0.0
  %1387 = vmatprep.subr.mxu0 0.0
  %1388 = vmatpush1.msra.mxu0 0.0
  %1389 = vmatprep.subr.mxu0 0.0
  %1390 = vmatpush1.msra.mxu0 0.0
  %1391 = vmatprep.subr.mxu0 0.0
  %1392 = vmatpush1.msra.mxu0 0.0
  %1393 = vmatprep.subr.mxu0 0.0
  %1394 = vmatpush1.msra.mxu0 0.0
  %1395 = vmatprep.subr.mxu0 0.0
  %1396 = vmatpush1.msra.mxu0 0.0
  %1397 = vmatprep.subr.mxu0 0.0
  %1398 = vmatpush1.msra.mxu0 0.0
  %1399 = vmatprep.subr.mxu0 0.0
  %1400 = vmatpush1.msra.mxu0 0.0
  %1401 = vmatprep.subr.mxu0 0.0
  %1402 = vmatpush1.msra.mxu0 0.0
  %1403 = vmatprep.subr.mxu0 0.0
  %1404 = vmatpush1.msra.mxu0 0.0
  %1405 = vmatprep.subr.mxu0 0.0
  %1406 = vmatpush1.msra.mxu0 0.0
  %1407 = vmatprep.subr.mxu0 0.0
  %1408 = vmatpush1.msra.mxu0 0.0
  %1409 = vmatprep.subr.mxu0 0.0
  %1410 = vmatpush1.msra.mxu0 0.0
  %1411 = vmatprep.subr.mxu0 0.0
  %1412 = vmatpush1.msra.mxu0 0.0
  %1413 = vmatprep.subr.mxu0 0.0
  %1414 = vmatpush1.msra.mxu0 0.0
  %1415 = vmatprep.subr.mxu0 0.0
  %1416 = vmatpush1.msra.mxu0 0.0
  %1417 = vmatprep.subr.mxu0 0.0
  %1418 = vmatpush1.msra.mxu0 0.0
  %1419 = vmatprep.subr.mxu0 0.0
  %1420 = vmatpush1.msra.mxu0 0.0
  %1421 = vmatprep.subr.mxu0 0.0
  %1422 = vmatpush1.msra.mxu0 0.0
  %1423 = vmatprep.subr.mxu0 0.0
  %1424 = vmatpush1.msra.mxu0 0.0
  %1425 = vmatprep.subr.mxu0 0.0
  %1426 = vmatpush1.msra.mxu0 0.0
  %1427 = vmatprep.subr.mxu0 0.0
  %1428 = vmatpush1.msra.mxu0 0.0
  %1429 = vmatprep.subr.mxu0 0.0
  %1430 = vmatpush1.msra.mxu0 0.0
  %1431 = vmatprep.mubr.f32.mxu0 0.0
  %1432 = vmatmul.mubr.f32.gmra.mrb[0].mxu0 %v515
  %v1433 = vpop.f32.mrb[0].mxu0
  %v1434 = vadd.f32 %v1357, %v1433
  %v1435 = vpop.f32.mrb[0].mxu0
  %v1436 = vadd.f32 %v1359, %v1435
  %1437 = vmatprep.mubr.f32.mxu0 0.0
  %1438 = vmatmul.mubr.f32.gmra.mrb[0].mxu0 %v518
  %v1439 = vpop.f32.mrb[0].mxu0
  %v1440 = vadd.f32 %v1363, %v1439
  %v1441 = vpop.f32.mrb[0].mxu0
  %v1442 = vadd.f32 %v1365, %v1441
  %1443 = vdwg.mxu0
  %v1444 = vld [vmem:[%s1] sm:$0xff]
  %v1445 = vld [vmem:[%s1 + $0x8] sm:$0xff]
  %1446 = vmatprep.subr.mxu0 %v820
  %1447 = vmatpush1.xpose.msra.mxu0 %v818
  %1448 = vmatprep.subr.mxu0 %v826
  %1449 = vmatpush1.xpose.msra.mxu0 %v824
  %1450 = vmatprep.subr.mxu0 0.0
  %1451 = vmatpush1.xpose.msra.mxu0 0.0
  %1452 = vmatprep.subr.mxu0 0.0
  %1453 = vmatpush1.xpose.msra.mxu0 0.0
  %1454 = vmatprep.subr.mxu0 0.0
  %1455 = vmatpush1.xpose.msra.mxu0 0.0
  %1456 = vmatprep.subr.mxu0 0.0
  %1457 = vmatpush1.xpose.msra.mxu0 0.0
  %1458 = vmatprep.subr.mxu0 0.0
  %1459 = vmatpush1.xpose.msra.mxu0 0.0
  %1460 = vmatprep.subr.mxu0 0.0
  %1461 = vmatpush1.xpose.msra.mxu0 0.0
  %1462 = vmatprep.subr.mxu0 0.0
  %1463 = vmatpush1.xpose.msra.mxu0 0.0
  %1464 = vmatprep.subr.mxu0 0.0
  %1465 = vmatpush1.xpose.msra.mxu0 0.0
  %1466 = vmatprep.subr.mxu0 0.0
  %1467 = vmatpush1.xpose.msra.mxu0 0.0
  %1468 = vmatprep.subr.mxu0 0.0
  %1469 = vmatpush1.xpose.msra.mxu0 0.0
  %1470 = vmatprep.subr.mxu0 0.0
  %1471 = vmatpush1.xpose.msra.mxu0 0.0
  %1472 = vmatprep.subr.mxu0 0.0
  %1473 = vmatpush1.xpose.msra.mxu0 0.0
  %1474 = vmatprep.subr.mxu0 0.0
  %1475 = vmatpush1.xpose.msra.mxu0 0.0
  %1476 = vmatprep.subr.mxu0 0.0
  %1477 = vmatpush1.xpose.msra.mxu0 0.0
  %1478 = vmatprep.subr.mxu0 0.0
  %1479 = vmatpush1.xpose.msra.mxu0 0.0
  %1480 = vmatprep.subr.mxu0 0.0
  %1481 = vmatpush1.xpose.msra.mxu0 0.0
  %1482 = vmatprep.subr.mxu0 0.0
  %1483 = vmatpush1.xpose.msra.mxu0 0.0
  %1484 = vmatprep.subr.mxu0 0.0
  %1485 = vmatpush1.xpose.msra.mxu0 0.0
  %1486 = vmatprep.subr.mxu0 0.0
  %1487 = vmatpush1.xpose.msra.mxu0 0.0
  %1488 = vmatprep.subr.mxu0 0.0
  %1489 = vmatpush1.xpose.msra.mxu0 0.0
  %1490 = vmatprep.subr.mxu0 0.0
  %1491 = vmatpush1.xpose.msra.mxu0 0.0
  %1492 = vmatprep.subr.mxu0 0.0
  %1493 = vmatpush1.xpose.msra.mxu0 0.0
  %1494 = vmatprep.subr.mxu0 0.0
  %1495 = vmatpush1.xpose.msra.mxu0 0.0
  %1496 = vmatprep.subr.mxu0 0.0
  %1497 = vmatpush1.xpose.msra.mxu0 0.0
  %1498 = vmatprep.subr.mxu0 0.0
  %1499 = vmatpush1.xpose.msra.mxu0 0.0
  %1500 = vmatprep.subr.mxu0 0.0
  %1501 = vmatpush1.xpose.msra.mxu0 0.0
  %1502 = vmatprep.subr.mxu0 0.0
  %1503 = vmatpush1.xpose.msra.mxu0 0.0
  %1504 = vmatprep.subr.mxu0 0.0
  %1505 = vmatpush1.xpose.msra.mxu0 0.0
  %1506 = vmatprep.subr.mxu0 0.0
  %1507 = vmatpush1.xpose.msra.mxu0 0.0
  %1508 = vmatprep.subr.mxu0 0.0
  %1509 = vmatpush1.xpose.msra.mxu0 0.0
  %1510 = vmatprep.mubr.f32.mxu0 %v666
  %1511 = vmatmul.mubr.f32.gmra.mrb[0].mxu0 %v664
  %v1512 = vpop.f32.mrb[0].mxu0
  %v1513 = vadd.f32 %v1444, %v1512
  %v1514 = vpop.f32.mrb[0].mxu0
  %1515 = vmatprep.mubr.f32.mxu0 %v672
  %1516 = vmatmul.mubr.f32.gmra.mrb[0].mxu0 %v670
  %v1517 = vpop.f32.mrb[0].mxu0
  %v1518 = vadd.f32 %v1445, %v1517
  %v1519 = vpop.f32.mrb[0].mxu0
  %1520 = vdwg.mxu0
  %vm1521 = vcmask 130048
  %v1522 = vsel %vm1521, %v1513, -inf
  %1523 = vmax.xlane.f32.xlu0 %v1522
  %v1524 = vpop.xlane.xlu0 %1523
  %v1525 = vsel %vm1521, %v1518, -inf
  %1526 = vmax.xlane.f32.xlu0 %v1525
  %v1527 = vpop.xlane.xlu0 %1526
  %v1528 = vsub.f32 %v1513, %v1524
  %v1529 = vsub.f32 %v1518, %v1527
  %v1530 = vmul.f32 %v1528, 1.442695
  %v1531 = vpow.pop %v1530
  %v1532 = vmul.f32 %v1529, 1.442695
  %v1533 = vpow.pop %v1532
  %v1534 = vsel %vm1521, %v1531, 0.0
  %1535 = vadd.xlane.f32.xlu0 %v1534
  %v1536 = vpop.xlane.xlu0 %1535
  %v1537 = vsel %vm1521, %v1533, 0.0
  %1538 = vadd.xlane.f32.xlu0 %v1537
  %v1539 = vpop.xlane.xlu0 %1538
  %v1540 = vrcp.pop %v1536
  %v1541 = vrcp.pop %v1539
  %v1542 = vmul.f32 %v1531, %v1540
  %v1543 = vmul.f32 %v1533, %v1541
  %v1545 = vsel %vm1521, %v1542, 0
  %v1548 = vsel %vm1521, %v1543, 0
  %1550 = vmatprep.subr.mxu0 %v974
  %1551 = vmatpush1.msra.mxu0 %v972
  %1552 = vmatprep.subr.mxu0 %v980
  %1553 = vmatpush1.msra.mxu0 %v978
  %1554 = vmatprep.subr.mxu0 0.0
  %1555 = vmatpush1.msra.mxu0 0.0
  %1556 = vmatprep.subr.mxu0 0.0
  %1557 = vmatpush1.msra.mxu0 0.0
  %1558 = vmatprep.subr.mxu0 0.0
  %1559 = vmatpush1.msra.mxu0 0.0
  %1560 = vmatprep.subr.mxu0 0.0
  %1561 = vmatpush1.msra.mxu0 0.0
  %1562 = vmatprep.subr.mxu0 0.0
  %1563 = vmatpush1.msra.mxu0 0.0
  %1564 = vmatprep.subr.mxu0 0.0
  %1565 = vmatpush1.msra.mxu0 0.0
  %1566 = vmatprep.subr.mxu0 0.0
  %1567 = vmatpush1.msra.mxu0 0.0
  %1568 = vmatprep.subr.mxu0 0.0
  %1569 = vmatpush1.msra.mxu0 0.0
  %1570 = vmatprep.subr.mxu0 0.0
  %1571 = vmatpush1.msra.mxu0 0.0
  %1572 = vmatprep.subr.mxu0 0.0
  %1573 = vmatpush1.msra.mxu0 0.0
  %1574 = vmatprep.subr.mxu0 0.0
  %1575 = vmatpush1.msra.mxu0 0.0
  %1576 = vmatprep.subr.mxu0 0.0
  %1577 = vmatpush1.msra.mxu0 0.0
  %1578 = vmatprep.subr.mxu0 0.0
  %1579 = vmatpush1.msra.mxu0 0.0
  %1580 = vmatprep.subr.mxu0 0.0
  %1581 = vmatpush1.msra.mxu0 0.0
  %1582 = vmatprep.subr.mxu0 0.0
  %1583 = vmatpush1.msra.mxu0 0.0
  %1584 = vmatprep.subr.mxu0 0.0
  %1585 = vmatpush1.msra.mxu0 0.0
  %1586 = vmatprep.subr.mxu0 0.0
  %1587 = vmatpush1.msra.mxu0 0.0
  %1588 = vmatprep.subr.mxu0 0.0
  %1589 = vmatpush1.msra.mxu0 0.0
  %1590 = vmatprep.subr.mxu0 0.0
  %1591 = vmatpush1.msra.mxu0 0.0
  %1592 = vmatprep.subr.mxu0 0.0
  %1593 = vmatpush1.msra.mxu0 0.0
  %1594 = vmatprep.subr.mxu0 0.0
  %1595 = vmatpush1.msra.mxu0 0.0
  %1596 = vmatprep.subr.mxu0 0.0
  %1597 = vmatpush1.msra.mxu0 0.0
  %1598 = vmatprep.subr.mxu0 0.0
  %1599 = vmatpush1.msra.mxu0 0.0
  %1600 = vmatprep.subr.mxu0 0.0
  %1601 = vmatpush1.msra.mxu0 0.0
  %1602 = vmatprep.subr.mxu0 0.0
  %1603 = vmatpush1.msra.mxu0 0.0
  %1604 = vmatprep.subr.mxu0 0.0
  %1605 = vmatpush1.msra.mxu0 0.0
  %1606 = vmatprep.subr.mxu0 0.0
  %1607 = vmatpush1.msra.mxu0 0.0
  %1608 = vmatprep.subr.mxu0 0.0
  %1609 = vmatpush1.msra.mxu0 0.0
  %1610 = vmatprep.subr.mxu0 0.0
  %1611 = vmatpush1.msra.mxu0 0.0
  %1612 = vmatprep.subr.mxu0 0.0
  %1613 = vmatpush1.msra.mxu0 0.0
  %1614 = vmatprep.mubr.f32.mxu0 0.0
  %1615 = vmatmul.mubr.f32.gmra.mrb[0].mxu0 %v1545
  %v1616 = vpop.f32.mrb[0].mxu0
  %v1617 = vadd.f32 0.0, %v1616
  %v1618 = vpop.f32.mrb[0].mxu0
  %v1619 = vadd.f32 0.0, %v1618
  %1620 = vmatprep.mubr.f32.mxu0 0.0
  %1621 = vmatmul.mubr.f32.gmra.mrb[0].mxu0 %v1548
  %v1622 = vpop.f32.mrb[0].mxu0
  %v1623 = vadd.f32 0.0, %v1622
  %v1624 = vpop.f32.mrb[0].mxu0
  %v1625 = vadd.f32 0.0, %v1624
  %1626 = vdwg.mxu0
  %v1627 = vld [vmem:[%s4] sm:$0xff]
  %v1628 = vld [vmem:[%s4 + $0x8] sm:$0xff]
  %v1629 = vld [vmem:[%s4 + $0x10] sm:$0xff]
  %v1630 = vld [vmem:[%s4 + $0x18] sm:$0xff]
  %v1631 = vld [vmem:[%s4 + $0x20] sm:$0xff]
  %v1632 = vld [vmem:[%s4 + $0x28] sm:$0xff]
  %v1633 = vld [vmem:[%s4 + $0x30] sm:$0xff]
  %v1634 = vld [vmem:[%s4 + $0x38] sm:$0xff]
  %v1635 = vld [vmem:[%s4 + $0x40] sm:$0xff]
  %v1636 = vld [vmem:[%s4 + $0x48] sm:$0xff]
  %v1637 = vld [vmem:[%s4 + $0x50] sm:$0xff]
  %v1638 = vld [vmem:[%s4 + $0x58] sm:$0xff]
  %v1639 = vld [vmem:[%s4 + $0x60] sm:$0xff]
  %v1640 = vld [vmem:[%s4 + $0x68] sm:$0xff]
  %v1641 = vld [vmem:[%s4 + $0x70] sm:$0xff]
  %v1642 = vld [vmem:[%s4 + $0x78] sm:$0xff]
  %v1643 = vld [vmem:[%s4 + $0x80] sm:$0xff]
  %v1644 = vld [vmem:[%s4 + $0x88] sm:$0xff]
  %v1645 = vld [vmem:[%s4 + $0x90] sm:$0xff]
  %v1646 = vld [vmem:[%s4 + $0x98] sm:$0xff]
  %v1647 = vld [vmem:[%s4 + $0xa0] sm:$0xff]
  %v1648 = vld [vmem:[%s4 + $0xa8] sm:$0xff]
  %v1649 = vld [vmem:[%s4 + $0xb0] sm:$0xff]
  %v1650 = vld [vmem:[%s4 + $0xb8] sm:$0xff]
  %v1651 = vld [vmem:[%s4 + $0xc0] sm:$0xff]
  %v1652 = vld [vmem:[%s4 + $0xc8] sm:$0xff]
  %v1653 = vld [vmem:[%s4 + $0xd0] sm:$0xff]
  %v1654 = vld [vmem:[%s4 + $0xd8] sm:$0xff]
  %v1655 = vld [vmem:[%s4 + $0xe0] sm:$0xff]
  %v1656 = vld [vmem:[%s4 + $0xe8] sm:$0xff]
  %v1657 = vld [vmem:[%s4 + $0xf0] sm:$0xff]
  %v1658 = vld [vmem:[%s4 + $0xf8] sm:$0xff]
  %v1659 = vld [vmem:[%s4 + $0x100] sm:$0xff]
  %v1660 = vld [vmem:[%s4 + $0x108] sm:$0xff]
  %v1661 = vld [vmem:[%s4 + $0x110] sm:$0xff]
  %v1662 = vld [vmem:[%s4 + $0x118] sm:$0xff]
  %v1663 = vld [vmem:[%s4 + $0x120] sm:$0xff]
  %v1664 = vld [vmem:[%s4 + $0x128] sm:$0xff]
  %v1665 = vld [vmem:[%s4 + $0x130] sm:$0xff]
  %v1666 = vld [vmem:[%s4 + $0x138] sm:$0xff]
  %v1667 = vld [vmem:[%s4 + $0x140] sm:$0xff]
  %v1668 = vld [vmem:[%s4 + $0x148] sm:$0xff]
  %v1669 = vld [vmem:[%s4 + $0x150] sm:$0xff]
  %v1670 = vld [vmem:[%s4 + $0x158] sm:$0xff]
  %v1671 = vld [vmem:[%s4 + $0x160] sm:$0xff]
  %v1672 = vld [vmem:[%s4 + $0x168] sm:$0xff]
  %v1673 = vld [vmem:[%s4 + $0x170] sm:$0xff]
  %v1674 = vld [vmem:[%s4 + $0x178] sm:$0xff]
  %v1675 = vld [vmem:[%s4 + $0x180] sm:$0xff]
  %v1676 = vld [vmem:[%s4 + $0x188] sm:$0xff]
  %v1677 = vld [vmem:[%s4 + $0x190] sm:$0xff]
  %v1678 = vld [vmem:[%s4 + $0x198] sm:$0xff]
  %v1679 = vld [vmem:[%s4 + $0x1a0] sm:$0xff]
  %v1680 = vld [vmem:[%s4 + $0x1a8] sm:$0xff]
  %v1681 = vld [vmem:[%s4 + $0x1b0] sm:$0xff]
  %v1682 = vld [vmem:[%s4 + $0x1b8] sm:$0xff]
  %v1683 = vld [vmem:[%s4 + $0x1c0] sm:$0xff]
  %v1684 = vld [vmem:[%s4 + $0x1c8] sm:$0xff]
  %v1685 = vld [vmem:[%s4 + $0x1d0] sm:$0xff]
  %v1686 = vld [vmem:[%s4 + $0x1d8] sm:$0xff]
  %v1687 = vld [vmem:[%s4 + $0x1e0] sm:$0xff]
  %v1688 = vld [vmem:[%s4 + $0x1e8] sm:$0xff]
  %v1689 = vld [vmem:[%s4 + $0x1f0] sm:$0xff]
  %v1690 = vld [vmem:[%s4 + $0x1f8] sm:$0xff]
  %v1691 = vld [vmem:[%s4 + $0x200] sm:$0xff]
  %v1692 = vld [vmem:[%s4 + $0x208] sm:$0xff]
  %v1693 = vld [vmem:[%s4 + $0x210] sm:$0xff]
  %v1694 = vld [vmem:[%s4 + $0x218] sm:$0xff]
  %v1695 = vld [vmem:[%s4 + $0x220] sm:$0xff]
  %v1696 = vld [vmem:[%s4 + $0x228] sm:$0xff]
  %v1697 = vld [vmem:[%s4 + $0x230] sm:$0xff]
  %v1698 = vld [vmem:[%s4 + $0x238] sm:$0xff]
  %v1699 = vld [vmem:[%s4 + $0x240] sm:$0xff]
  %v1700 = vld [vmem:[%s4 + $0x248] sm:$0xff]
  %v1701 = vld [vmem:[%s4 + $0x250] sm:$0xff]
  %v1702 = vld [vmem:[%s4 + $0x258] sm:$0xff]
  %v1703 = vld [vmem:[%s4 + $0x260] sm:$0xff]
  %v1704 = vld [vmem:[%s4 + $0x268] sm:$0xff]
  %v1705 = vld [vmem:[%s4 + $0x270] sm:$0xff]
  %v1706 = vld [vmem:[%s4 + $0x278] sm:$0xff]
  %v1707 = vld [vmem:[%s4 + $0x280] sm:$0xff]
  %v1708 = vld [vmem:[%s4 + $0x288] sm:$0xff]
  %v1709 = vld [vmem:[%s4 + $0x290] sm:$0xff]
  %v1710 = vld [vmem:[%s4 + $0x298] sm:$0xff]
  %v1711 = vld [vmem:[%s4 + $0x2a0] sm:$0xff]
  %v1712 = vld [vmem:[%s4 + $0x2a8] sm:$0xff]
  %v1713 = vld [vmem:[%s4 + $0x2b0] sm:$0xff]
  %v1714 = vld [vmem:[%s4 + $0x2b8] sm:$0xff]
  %v1715 = vld [vmem:[%s4 + $0x2c0] sm:$0xff]
  %v1716 = vld [vmem:[%s4 + $0x2c8] sm:$0xff]
  %v1717 = vld [vmem:[%s4 + $0x2d0] sm:$0xff]
  %v1718 = vld [vmem:[%s4 + $0x2d8] sm:$0xff]
  %v1719 = vld [vmem:[%s4 + $0x2e0] sm:$0xff]
  %v1720 = vld [vmem:[%s4 + $0x2e8] sm:$0xff]
  %v1721 = vld [vmem:[%s4 + $0x2f0] sm:$0xff]
  %v1722 = vld [vmem:[%s4 + $0x2f8] sm:$0xff]
  %1723 = vmatprep.subr.mxu0 %v1282
  %1724 = vmatpush1.xpose.msra.mxu0 %v1280
  %1725 = vmatprep.subr.mxu0 %v1288
  %1726 = vmatpush1.xpose.msra.mxu0 %v1286
  %1727 = vmatprep.subr.mxu0 0.0
  %1728 = vmatpush1.xpose.msra.mxu0 0.0
  %1729 = vmatprep.subr.mxu0 0.0
  %1730 = vmatpush1.xpose.msra.mxu0 0.0
  %1731 = vmatprep.subr.mxu0 0.0
  %1732 = vmatpush1.xpose.msra.mxu0 0.0
  %1733 = vmatprep.subr.mxu0 0.0
  %1734 = vmatpush1.xpose.msra.mxu0 0.0
  %1735 = vmatprep.subr.mxu0 0.0
  %1736 = vmatpush1.xpose.msra.mxu0 0.0
  %1737 = vmatprep.subr.mxu0 0.0
  %1738 = vmatpush1.xpose.msra.mxu0 0.0
  %1739 = vmatprep.subr.mxu0 0.0
  %1740 = vmatpush1.xpose.msra.mxu0 0.0
  %1741 = vmatprep.subr.mxu0 0.0
  %1742 = vmatpush1.xpose.msra.mxu0 0.0
  %1743 = vmatprep.subr.mxu0 0.0
  %1744 = vmatpush1.xpose.msra.mxu0 0.0
  %1745 = vmatprep.subr.mxu0 0.0
  %1746 = vmatpush1.xpose.msra.mxu0 0.0
  %1747 = vmatprep.subr.mxu0 0.0
  %1748 = vmatpush1.xpose.msra.mxu0 0.0
  %1749 = vmatprep.subr.mxu0 0.0
  %1750 = vmatpush1.xpose.msra.mxu0 0.0
  %1751 = vmatprep.subr.mxu0 0.0
  %1752 = vmatpush1.xpose.msra.mxu0 0.0
  %1753 = vmatprep.subr.mxu0 0.0
  %1754 = vmatpush1.xpose.msra.mxu0 0.0
  %1755 = vmatprep.subr.mxu0 0.0
  %1756 = vmatpush1.xpose.msra.mxu0 0.0
  %1757 = vmatprep.subr.mxu0 0.0
  %1758 = vmatpush1.xpose.msra.mxu0 0.0
  %1759 = vmatprep.subr.mxu0 0.0
  %1760 = vmatpush1.xpose.msra.mxu0 0.0
  %1761 = vmatprep.subr.mxu0 0.0
  %1762 = vmatpush1.xpose.msra.mxu0 0.0
  %1763 = vmatprep.subr.mxu0 0.0
  %1764 = vmatpush1.xpose.msra.mxu0 0.0
  %1765 = vmatprep.subr.mxu0 0.0
  %1766 = vmatpush1.xpose.msra.mxu0 0.0
  %1767 = vmatprep.subr.mxu0 0.0
  %1768 = vmatpush1.xpose.msra.mxu0 0.0
  %1769 = vmatprep.subr.mxu0 0.0
  %1770 = vmatpush1.xpose.msra.mxu0 0.0
  %1771 = vmatprep.subr.mxu0 0.0
  %1772 = vmatpush1.xpose.msra.mxu0 0.0
  %1773 = vmatprep.subr.mxu0 0.0
  %1774 = vmatpush1.xpose.msra.mxu0 0.0
  %1775 = vmatprep.subr.mxu0 0.0
  %1776 = vmatpush1.xpose.msra.mxu0 0.0
  %1777 = vmatprep.subr.mxu0 0.0
  %1778 = vmatpush1.xpose.msra.mxu0 0.0
  %1779 = vmatprep.subr.mxu0 0.0
  %1780 = vmatpush1.xpose.msra.mxu0 0.0
  %1781 = vmatprep.subr.mxu0 0.0
  %1782 = vmatpush1.xpose.msra.mxu0 0.0
  %1783 = vmatprep.subr.mxu0 0.0
  %1784 = vmatpush1.xpose.msra.mxu0 0.0
  %1785 = vmatprep.subr.mxu0 0.0
  %1786 = vmatpush1.xpose.msra.mxu0 0.0
  %1787 = vmatprep.mubr.f32.mxu0 %v1128
  %1788 = vmatmul.mubr.f32.gmra.mrb[0].mxu0 %v1126
  %v1789 = vpop.f32.mrb[0].mxu0
  %v1790 = vadd.f32 %v1444, %v1789
  %v1791 = vpop.f32.mrb[0].mxu0
  %1792 = vmatprep.mubr.f32.mxu0 %v1134
  %1793 = vmatmul.mubr.f32.gmra.mrb[0].mxu0 %v1132
  %v1794 = vpop.f32.mrb[0].mxu0
  %v1795 = vadd.f32 %v1445, %v1794
  %v1796 = vpop.f32.mrb[0].mxu0
  %1797 = vdwg.mxu0
  %v1798 = vsel %vm1521, %v1790, -inf
  %1799 = vmax.xlane.f32.xlu0 %v1798
  %v1800 = vpop.xlane.xlu0 %1799
  %v1801 = vsel %vm1521, %v1795, -inf
  %1802 = vmax.xlane.f32.xlu0 %v1801
  %v1803 = vpop.xlane.xlu0 %1802
  %v1804 = vsub.f32 %v1790, %v1800
  %v1805 = vsub.f32 %v1795, %v1803
  %v1806 = vmul.f32 %v1804, 1.442695
  %v1807 = vpow.pop %v1806
  %v1808 = vmul.f32 %v1805, 1.442695
  %v1809 = vpow.pop %v1808
  %v1810 = vsel %vm1521, %v1807, 0.0
  %1811 = vadd.xlane.f32.xlu0 %v1810
  %v1812 = vpop.xlane.xlu0 %1811
  %v1813 = vsel %vm1521, %v1809, 0.0
  %1814 = vadd.xlane.f32.xlu0 %v1813
  %v1815 = vpop.xlane.xlu0 %1814
  %v1816 = vrcp.pop %v1812
  %v1817 = vrcp.pop %v1815
  %v1818 = vmul.f32 %v1807, %v1816
  %v1819 = vmul.f32 %v1809, %v1817
  %v1821 = vsel %vm1521, %v1818, 0
  %v1824 = vsel %vm1521, %v1819, 0
  %1826 = vmatprep.subr.mxu0 %v1436
  %1827 = vmatpush1.msra.mxu0 %v1434
  %1828 = vmatprep.subr.mxu0 %v1442
  %1829 = vmatpush1.msra.mxu0 %v1440
  %1830 = vmatprep.subr.mxu0 0.0
  %1831 = vmatpush1.msra.mxu0 0.0
  %1832 = vmatprep.subr.mxu0 0.0
  %1833 = vmatpush1.msra.mxu0 0.0
  %1834 = vmatprep.subr.mxu0 0.0
  %1835 = vmatpush1.msra.mxu0 0.0
  %1836 = vmatprep.subr.mxu0 0.0
  %1837 = vmatpush1.msra.mxu0 0.0
  %1838 = vmatprep.subr.mxu0 0.0
  %1839 = vmatpush1.msra.mxu0 0.0
  %1840 = vmatprep.subr.mxu0 0.0
  %1841 = vmatpush1.msra.mxu0 0.0
  %1842 = vmatprep.subr.mxu0 0.0
  %1843 = vmatpush1.msra.mxu0 0.0
  %1844 = vmatprep.subr.mxu0 0.0
  %1845 = vmatpush1.msra.mxu0 0.0
  %1846 = vmatprep.subr.mxu0 0.0
  %1847 = vmatpush1.msra.mxu0 0.0
  %1848 = vmatprep.subr.mxu0 0.0
  %1849 = vmatpush1.msra.mxu0 0.0
  %1850 = vmatprep.subr.mxu0 0.0
  %1851 = vmatpush1.msra.mxu0 0.0
  %1852 = vmatprep.subr.mxu0 0.0
  %1853 = vmatpush1.msra.mxu0 0.0
  %1854 = vmatprep.subr.mxu0 0.0
  %1855 = vmatpush1.msra.mxu0 0.0
  %1856 = vmatprep.subr.mxu0 0.0
  %1857 = vmatpush1.msra.mxu0 0.0
  %1858 = vmatprep.subr.mxu0 0.0
  %1859 = vmatpush1.msra.mxu0 0.0
  %1860 = vmatprep.subr.mxu0 0.0
  %1861 = vmatpush1.msra.mxu0 0.0
  %1862 = vmatprep.subr.mxu0 0.0
  %1863 = vmatpush1.msra.mxu0 0.0
  %1864 = vmatprep.subr.mxu0 0.0
  %1865 = vmatpush1.msra.mxu0 0.0
  %1866 = vmatprep.subr.mxu0 0.0
  %1867 = vmatpush1.msra.mxu0 0.0
  %1868 = vmatprep.subr.mxu0 0.0
  %1869 = vmatpush1.msra.mxu0 0.0
  %1870 = vmatprep.subr.mxu0 0.0
  %1871 = vmatpush1.msra.mxu0 0.0
  %1872 = vmatprep.subr.mxu0 0.0
  %1873 = vmatpush1.msra.mxu0 0.0
  %1874 = vmatprep.subr.mxu0 0.0
  %1875 = vmatpush1.msra.mxu0 0.0
  %1876 = vmatprep.subr.mxu0 0.0
  %1877 = vmatpush1.msra.mxu0 0.0
  %1878 = vmatprep.subr.mxu0 0.0
  %1879 = vmatpush1.msra.mxu0 0.0
  %1880 = vmatprep.subr.mxu0 0.0
  %1881 = vmatpush1.msra.mxu0 0.0
  %1882 = vmatprep.subr.mxu0 0.0
  %1883 = vmatpush1.msra.mxu0 0.0
  %1884 = vmatprep.subr.mxu0 0.0
  %1885 = vmatpush1.msra.mxu0 0.0
  %1886 = vmatprep.subr.mxu0 0.0
  %1887 = vmatpush1.msra.mxu0 0.0
  %1888 = vmatprep.subr.mxu0 0.0
  %1889 = vmatpush1.msra.mxu0 0.0
  %1890 = vmatprep.mubr.f32.mxu0 0.0
  %1891 = vmatmul.mubr.f32.gmra.mrb[0].mxu0 %v1821
  %v1892 = vpop.f32.mrb[0].mxu0
  %v1893 = vadd.f32 0.0, %v1892
  %v1894 = vpop.f32.mrb[0].mxu0
  %v1895 = vadd.f32 0.0, %v1894
  %1896 = vmatprep.mubr.f32.mxu0 0.0
  %1897 = vmatmul.mubr.f32.gmra.mrb[0].mxu0 %v1824
  %v1898 = vpop.f32.mrb[0].mxu0
  %v1899 = vadd.f32 0.0, %v1898
  %v1900 = vpop.f32.mrb[0].mxu0
  %v1901 = vadd.f32 0.0, %v1900
  %1902 = vdwg.mxu0
  %s1903 = scalar_lea.vmem %s4, 768
  %v1904 = vld [vmem:[%s1903] sm:$0xff]
  %v1905 = vld [vmem:[%s1903 + $0x8] sm:$0xff]
  %v1906 = vld [vmem:[%s1903 + $0x10] sm:$0xff]
  %v1907 = vld [vmem:[%s1903 + $0x18] sm:$0xff]
  %v1908 = vld [vmem:[%s1903 + $0x20] sm:$0xff]
  %v1909 = vld [vmem:[%s1903 + $0x28] sm:$0xff]
  %v1910 = vld [vmem:[%s1903 + $0x30] sm:$0xff]
  %v1911 = vld [vmem:[%s1903 + $0x38] sm:$0xff]
  %v1912 = vld [vmem:[%s1903 + $0x40] sm:$0xff]
  %v1913 = vld [vmem:[%s1903 + $0x48] sm:$0xff]
  %v1914 = vld [vmem:[%s1903 + $0x50] sm:$0xff]
  %v1915 = vld [vmem:[%s1903 + $0x58] sm:$0xff]
  %v1916 = vld [vmem:[%s1903 + $0x60] sm:$0xff]
  %v1917 = vld [vmem:[%s1903 + $0x68] sm:$0xff]
  %v1918 = vld [vmem:[%s1903 + $0x70] sm:$0xff]
  %v1919 = vld [vmem:[%s1903 + $0x78] sm:$0xff]
  %v1920 = vld [vmem:[%s1903 + $0x80] sm:$0xff]
  %v1921 = vld [vmem:[%s1903 + $0x88] sm:$0xff]
  %v1922 = vld [vmem:[%s1903 + $0x90] sm:$0xff]
  %v1923 = vld [vmem:[%s1903 + $0x98] sm:$0xff]
  %v1924 = vld [vmem:[%s1903 + $0xa0] sm:$0xff]
  %v1925 = vld [vmem:[%s1903 + $0xa8] sm:$0xff]
  %v1926 = vld [vmem:[%s1903 + $0xb0] sm:$0xff]
  %v1927 = vld [vmem:[%s1903 + $0xb8] sm:$0xff]
  %v1928 = vld [vmem:[%s1903 + $0xc0] sm:$0xff]
  %v1929 = vld [vmem:[%s1903 + $0xc8] sm:$0xff]
  %v1930 = vld [vmem:[%s1903 + $0xd0] sm:$0xff]
  %v1931 = vld [vmem:[%s1903 + $0xd8] sm:$0xff]
  %v1932 = vld [vmem:[%s1903 + $0xe0] sm:$0xff]
  %v1933 = vld [vmem:[%s1903 + $0xe8] sm:$0xff]
  %v1934 = vld [vmem:[%s1903 + $0xf0] sm:$0xff]
  %v1935 = vld [vmem:[%s1903 + $0xf8] sm:$0xff]
  %v1936 = vld [vmem:[%s1903 + $0x100] sm:$0xff]
  %v1937 = vld [vmem:[%s1903 + $0x108] sm:$0xff]
  %v1938 = vld [vmem:[%s1903 + $0x110] sm:$0xff]
  %v1939 = vld [vmem:[%s1903 + $0x118] sm:$0xff]
  %v1940 = vld [vmem:[%s1903 + $0x120] sm:$0xff]
  %v1941 = vld [vmem:[%s1903 + $0x128] sm:$0xff]
  %v1942 = vld [vmem:[%s1903 + $0x130] sm:$0xff]
  %v1943 = vld [vmem:[%s1903 + $0x138] sm:$0xff]
  %v1944 = vld [vmem:[%s1903 + $0x140] sm:$0xff]
  %v1945 = vld [vmem:[%s1903 + $0x148] sm:$0xff]
  %v1946 = vld [vmem:[%s1903 + $0x150] sm:$0xff]
  %v1947 = vld [vmem:[%s1903 + $0x158] sm:$0xff]
  %v1948 = vld [vmem:[%s1903 + $0x160] sm:$0xff]
  %v1949 = vld [vmem:[%s1903 + $0x168] sm:$0xff]
  %v1950 = vld [vmem:[%s1903 + $0x170] sm:$0xff]
  %v1951 = vld [vmem:[%s1903 + $0x178] sm:$0xff]
  %v1952 = vld [vmem:[%s1903 + $0x180] sm:$0xff]
  %v1953 = vld [vmem:[%s1903 + $0x188] sm:$0xff]
  %v1954 = vld [vmem:[%s1903 + $0x190] sm:$0xff]
  %v1955 = vld [vmem:[%s1903 + $0x198] sm:$0xff]
  %v1956 = vld [vmem:[%s1903 + $0x1a0] sm:$0xff]
  %v1957 = vld [vmem:[%s1903 + $0x1a8] sm:$0xff]
  %v1958 = vld [vmem:[%s1903 + $0x1b0] sm:$0xff]
  %v1959 = vld [vmem:[%s1903 + $0x1b8] sm:$0xff]
  %v1960 = vld [vmem:[%s1903 + $0x1c0] sm:$0xff]
  %v1961 = vld [vmem:[%s1903 + $0x1c8] sm:$0xff]
  %v1962 = vld [vmem:[%s1903 + $0x1d0] sm:$0xff]
  %v1963 = vld [vmem:[%s1903 + $0x1d8] sm:$0xff]
  %v1964 = vld [vmem:[%s1903 + $0x1e0] sm:$0xff]
  %v1965 = vld [vmem:[%s1903 + $0x1e8] sm:$0xff]
  %v1966 = vld [vmem:[%s1903 + $0x1f0] sm:$0xff]
  %v1967 = vld [vmem:[%s1903 + $0x1f8] sm:$0xff]
  %v1968 = vld [vmem:[%s1903 + $0x200] sm:$0xff]
  %v1969 = vld [vmem:[%s1903 + $0x208] sm:$0xff]
  %v1970 = vld [vmem:[%s1903 + $0x210] sm:$0xff]
  %v1971 = vld [vmem:[%s1903 + $0x218] sm:$0xff]
  %v1972 = vld [vmem:[%s1903 + $0x220] sm:$0xff]
  %v1973 = vld [vmem:[%s1903 + $0x228] sm:$0xff]
  %v1974 = vld [vmem:[%s1903 + $0x230] sm:$0xff]
  %v1975 = vld [vmem:[%s1903 + $0x238] sm:$0xff]
  %v1976 = vld [vmem:[%s1903 + $0x240] sm:$0xff]
  %v1977 = vld [vmem:[%s1903 + $0x248] sm:$0xff]
  %v1978 = vld [vmem:[%s1903 + $0x250] sm:$0xff]
  %v1979 = vld [vmem:[%s1903 + $0x258] sm:$0xff]
  %v1980 = vld [vmem:[%s1903 + $0x260] sm:$0xff]
  %v1981 = vld [vmem:[%s1903 + $0x268] sm:$0xff]
  %v1982 = vld [vmem:[%s1903 + $0x270] sm:$0xff]
  %v1983 = vld [vmem:[%s1903 + $0x278] sm:$0xff]
  %v1984 = vld [vmem:[%s1903 + $0x280] sm:$0xff]
  %v1985 = vld [vmem:[%s1903 + $0x288] sm:$0xff]
  %v1986 = vld [vmem:[%s1903 + $0x290] sm:$0xff]
  %v1987 = vld [vmem:[%s1903 + $0x298] sm:$0xff]
  %v1988 = vld [vmem:[%s1903 + $0x2a0] sm:$0xff]
  %v1989 = vld [vmem:[%s1903 + $0x2a8] sm:$0xff]
  %v1990 = vld [vmem:[%s1903 + $0x2b0] sm:$0xff]
  %v1991 = vld [vmem:[%s1903 + $0x2b8] sm:$0xff]
  %v1992 = vld [vmem:[%s1903 + $0x2c0] sm:$0xff]
  %v1993 = vld [vmem:[%s1903 + $0x2c8] sm:$0xff]
  %v1994 = vld [vmem:[%s1903 + $0x2d0] sm:$0xff]
  %v1995 = vld [vmem:[%s1903 + $0x2d8] sm:$0xff]
  %v1996 = vld [vmem:[%s1903 + $0x2e0] sm:$0xff]
  %v1997 = vld [vmem:[%s1903 + $0x2e8] sm:$0xff]
  %v1998 = vld [vmem:[%s1903 + $0x2f0] sm:$0xff]
  %v1999 = vld [vmem:[%s1903 + $0x2f8] sm:$0xff]
  %2000 = vmatprep.subr.mxu0 %v1905
  %2001 = vmatpush1.msra.mxu0 %v1904
  %2002 = vmatprep.subr.mxu0 %v1908
  %2003 = vmatpush1.msra.mxu0 %v1907
  %2004 = vmatprep.subr.mxu0 %v1911
  %2005 = vmatpush1.msra.mxu0 %v1910
  %2006 = vmatprep.subr.mxu0 %v1914
  %2007 = vmatpush1.msra.mxu0 %v1913
  %2008 = vmatprep.subr.mxu0 %v1917
  %2009 = vmatpush1.msra.mxu0 %v1916
  %2010 = vmatprep.subr.mxu0 %v1920
  %2011 = vmatpush1.msra.mxu0 %v1919
  %2012 = vmatprep.subr.mxu0 %v1923
  %2013 = vmatpush1.msra.mxu0 %v1922
  %2014 = vmatprep.subr.mxu0 %v1926
  %2015 = vmatpush1.msra.mxu0 %v1925
  %2016 = vmatprep.subr.mxu0 %v1929
  %2017 = vmatpush1.msra.mxu0 %v1928
  %2018 = vmatprep.subr.mxu0 %v1932
  %2019 = vmatpush1.msra.mxu0 %v1931
  %2020 = vmatprep.subr.mxu0 %v1935
  %2021 = vmatpush1.msra.mxu0 %v1934
  %2022 = vmatprep.subr.mxu0 %v1938
  %2023 = vmatpush1.msra.mxu0 %v1937
  %2024 = vmatprep.subr.mxu0 %v1941
  %2025 = vmatpush1.msra.mxu0 %v1940
  %2026 = vmatprep.subr.mxu0 %v1944
  %2027 = vmatpush1.msra.mxu0 %v1943
  %2028 = vmatprep.subr.mxu0 %v1947
  %2029 = vmatpush1.msra.mxu0 %v1946
  %2030 = vmatprep.subr.mxu0 %v1950
  %2031 = vmatpush1.msra.mxu0 %v1949
  %2032 = vmatprep.subr.mxu0 %v1953
  %2033 = vmatpush1.msra.mxu0 %v1952
  %2034 = vmatprep.subr.mxu0 %v1956
  %2035 = vmatpush1.msra.mxu0 %v1955
  %2036 = vmatprep.subr.mxu0 %v1959
  %2037 = vmatpush1.msra.mxu0 %v1958
  %2038 = vmatprep.subr.mxu0 %v1962
  %2039 = vmatpush1.msra.mxu0 %v1961
  %2040 = vmatprep.subr.mxu0 %v1965
  %2041 = vmatpush1.msra.mxu0 %v1964
  %2042 = vmatprep.subr.mxu0 %v1968
  %2043 = vmatpush1.msra.mxu0 %v1967
  %2044 = vmatprep.subr.mxu0 %v1971
  %2045 = vmatpush1.msra.mxu0 %v1970
  %2046 = vmatprep.subr.mxu0 %v1974
  %2047 = vmatpush1.msra.mxu0 %v1973
  %2048 = vmatprep.subr.mxu0 %v1977
  %2049 = vmatpush1.msra.mxu0 %v1976
  %2050 = vmatprep.subr.mxu0 %v1980
  %2051 = vmatpush1.msra.mxu0 %v1979
  %2052 = vmatprep.subr.mxu0 %v1983
  %2053 = vmatpush1.msra.mxu0 %v1982
  %2054 = vmatprep.subr.mxu0 %v1986
  %2055 = vmatpush1.msra.mxu0 %v1985
  %2056 = vmatprep.subr.mxu0 %v1989
  %2057 = vmatpush1.msra.mxu0 %v1988
  %2058 = vmatprep.subr.mxu0 %v1992
  %2059 = vmatpush1.msra.mxu0 %v1991
  %2060 = vmatprep.subr.mxu0 %v1995
  %2061 = vmatpush1.msra.mxu0 %v1994
  %2062 = vmatprep.subr.mxu0 %v1998
  %2063 = vmatpush1.msra.mxu0 %v1997
  %2064 = vmatprep.mubr.f32.mxu0 %v1895
  %2065 = vmatmul.mubr.f32.gmra.mrb[0].mxu0 %v1893
  %v2066 = vpop.f32.mrb[0].mxu0
  %v2067 = vadd.f32 0.0, %v2066
  %v2068 = vpop.f32.mrb[0].mxu0
  %v2069 = vadd.f32 0.0, %v2068
  %2070 = vmatprep.mubr.f32.mxu0 %v1901
  %2071 = vmatmul.mubr.f32.gmra.mrb[0].mxu0 %v1899
  %v2072 = vpop.f32.mrb[0].mxu0
  %v2073 = vadd.f32 0.0, %v2072
  %v2074 = vpop.f32.mrb[0].mxu0
  %v2075 = vadd.f32 0.0, %v2074
  %2076 = vdwg.mxu0
  %2077 = vmatprep.subr.mxu0 0.0
  %2078 = vmatpush1.msra.mxu0 %v1906
  %2079 = vmatprep.subr.mxu0 0.0
  %2080 = vmatpush1.msra.mxu0 %v1909
  %2081 = vmatprep.subr.mxu0 0.0
  %2082 = vmatpush1.msra.mxu0 %v1912
  %2083 = vmatprep.subr.mxu0 0.0
  %2084 = vmatpush1.msra.mxu0 %v1915
  %2085 = vmatprep.subr.mxu0 0.0
  %2086 = vmatpush1.msra.mxu0 %v1918
  %2087 = vmatprep.subr.mxu0 0.0
  %2088 = vmatpush1.msra.mxu0 %v1921
  %2089 = vmatprep.subr.mxu0 0.0
  %2090 = vmatpush1.msra.mxu0 %v1924
  %2091 = vmatprep.subr.mxu0 0.0
  %2092 = vmatpush1.msra.mxu0 %v1927
  %2093 = vmatprep.subr.mxu0 0.0
  %2094 = vmatpush1.msra.mxu0 %v1930
  %2095 = vmatprep.subr.mxu0 0.0
  %2096 = vmatpush1.msra.mxu0 %v1933
  %2097 = vmatprep.subr.mxu0 0.0
  %2098 = vmatpush1.msra.mxu0 %v1936
  %2099 = vmatprep.subr.mxu0 0.0
  %2100 = vmatpush1.msra.mxu0 %v1939
  %2101 = vmatprep.subr.mxu0 0.0
  %2102 = vmatpush1.msra.mxu0 %v1942
  %2103 = vmatprep.subr.mxu0 0.0
  %2104 = vmatpush1.msra.mxu0 %v1945
  %2105 = vmatprep.subr.mxu0 0.0
  %2106 = vmatpush1.msra.mxu0 %v1948
  %2107 = vmatprep.subr.mxu0 0.0
  %2108 = vmatpush1.msra.mxu0 %v1951
  %2109 = vmatprep.subr.mxu0 0.0
  %2110 = vmatpush1.msra.mxu0 %v1954
  %2111 = vmatprep.subr.mxu0 0.0
  %2112 = vmatpush1.msra.mxu0 %v1957
  %2113 = vmatprep.subr.mxu0 0.0
  %2114 = vmatpush1.msra.mxu0 %v1960
  %2115 = vmatprep.subr.mxu0 0.0
  %2116 = vmatpush1.msra.mxu0 %v1963
  %2117 = vmatprep.subr.mxu0 0.0
  %2118 = vmatpush1.msra.mxu0 %v1966
  %2119 = vmatprep.subr.mxu0 0.0
  %2120 = vmatpush1.msra.mxu0 %v1969
  %2121 = vmatprep.subr.mxu0 0.0
  %2122 = vmatpush1.msra.mxu0 %v1972
  %2123 = vmatprep.subr.mxu0 0.0
  %2124 = vmatpush1.msra.mxu0 %v1975
  %2125 = vmatprep.subr.mxu0 0.0
  %2126 = vmatpush1.msra.mxu0 %v1978
  %2127 = vmatprep.subr.mxu0 0.0
  %2128 = vmatpush1.msra.mxu0 %v1981
  %2129 = vmatprep.subr.mxu0 0.0
  %2130 = vmatpush1.msra.mxu0 %v1984
  %2131 = vmatprep.subr.mxu0 0.0
  %2132 = vmatpush1.msra.mxu0 %v1987
  %2133 = vmatprep.subr.mxu0 0.0
  %2134 = vmatpush1.msra.mxu0 %v1990
  %2135 = vmatprep.subr.mxu0 0.0
  %2136 = vmatpush1.msra.mxu0 %v1993
  %2137 = vmatprep.subr.mxu0 0.0
  %2138 = vmatpush1.msra.mxu0 %v1996
  %2139 = vmatprep.subr.mxu0 0.0
  %2140 = vmatpush1.msra.mxu0 %v1999
  %2141 = vmatprep.mubr.f32.mxu0 %v1895
  %2142 = vmatmul.mubr.f32.gmra.mrb[0].mxu0 %v1893
  %v2143 = vpop.f32.mrb[0].mxu0
  %v2144 = vadd.f32 0.0, %v2143
  %v2145 = vpop.f32.mrb[0].mxu0
  %2146 = vmatprep.mubr.f32.mxu0 %v1901
  %2147 = vmatmul.mubr.f32.gmra.mrb[0].mxu0 %v1899
  %v2148 = vpop.f32.mrb[0].mxu0
  %v2149 = vadd.f32 0.0, %v2148
  %v2150 = vpop.f32.mrb[0].mxu0
  %2151 = vdwg.mxu0
  %2152 = vmatprep.subr.mxu0 %v1628
  %2153 = vmatpush1.msra.mxu0 %v1627
  %2154 = vmatprep.subr.mxu0 %v1631
  %2155 = vmatpush1.msra.mxu0 %v1630
  %2156 = vmatprep.subr.mxu0 %v1634
  %2157 = vmatpush1.msra.mxu0 %v1633
  %2158 = vmatprep.subr.mxu0 %v1637
  %2159 = vmatpush1.msra.mxu0 %v1636
  %2160 = vmatprep.subr.mxu0 %v1640
  %2161 = vmatpush1.msra.mxu0 %v1639
  %2162 = vmatprep.subr.mxu0 %v1643
  %2163 = vmatpush1.msra.mxu0 %v1642
  %2164 = vmatprep.subr.mxu0 %v1646
  %2165 = vmatpush1.msra.mxu0 %v1645
  %2166 = vmatprep.subr.mxu0 %v1649
  %2167 = vmatpush1.msra.mxu0 %v1648
  %2168 = vmatprep.subr.mxu0 %v1652
  %2169 = vmatpush1.msra.mxu0 %v1651
  %2170 = vmatprep.subr.mxu0 %v1655
  %2171 = vmatpush1.msra.mxu0 %v1654
  %2172 = vmatprep.subr.mxu0 %v1658
  %2173 = vmatpush1.msra.mxu0 %v1657
  %2174 = vmatprep.subr.mxu0 %v1661
  %2175 = vmatpush1.msra.mxu0 %v1660
  %2176 = vmatprep.subr.mxu0 %v1664
  %2177 = vmatpush1.msra.mxu0 %v1663
  %2178 = vmatprep.subr.mxu0 %v1667
  %2179 = vmatpush1.msra.mxu0 %v1666
  %2180 = vmatprep.subr.mxu0 %v1670
  %2181 = vmatpush1.msra.mxu0 %v1669
  %2182 = vmatprep.subr.mxu0 %v1673
  %2183 = vmatpush1.msra.mxu0 %v1672
  %2184 = vmatprep.subr.mxu0 %v1676
  %2185 = vmatpush1.msra.mxu0 %v1675
  %2186 = vmatprep.subr.mxu0 %v1679
  %2187 = vmatpush1.msra.mxu0 %v1678
  %2188 = vmatprep.subr.mxu0 %v1682
  %2189 = vmatpush1.msra.mxu0 %v1681
  %2190 = vmatprep.subr.mxu0 %v1685
  %2191 = vmatpush1.msra.mxu0 %v1684
  %2192 = vmatprep.subr.mxu0 %v1688
  %2193 = vmatpush1.msra.mxu0 %v1687
  %2194 = vmatprep.subr.mxu0 %v1691
  %2195 = vmatpush1.msra.mxu0 %v1690
  %2196 = vmatprep.subr.mxu0 %v1694
  %2197 = vmatpush1.msra.mxu0 %v1693
  %2198 = vmatprep.subr.mxu0 %v1697
  %2199 = vmatpush1.msra.mxu0 %v1696
  %2200 = vmatprep.subr.mxu0 %v1700
  %2201 = vmatpush1.msra.mxu0 %v1699
  %2202 = vmatprep.subr.mxu0 %v1703
  %2203 = vmatpush1.msra.mxu0 %v1702
  %2204 = vmatprep.subr.mxu0 %v1706
  %2205 = vmatpush1.msra.mxu0 %v1705
  %2206 = vmatprep.subr.mxu0 %v1709
  %2207 = vmatpush1.msra.mxu0 %v1708
  %2208 = vmatprep.subr.mxu0 %v1712
  %2209 = vmatpush1.msra.mxu0 %v1711
  %2210 = vmatprep.subr.mxu0 %v1715
  %2211 = vmatpush1.msra.mxu0 %v1714
  %2212 = vmatprep.subr.mxu0 %v1718
  %2213 = vmatpush1.msra.mxu0 %v1717
  %2214 = vmatprep.subr.mxu0 %v1721
  %2215 = vmatpush1.msra.mxu0 %v1720
  %2216 = vmatprep.mubr.f32.mxu0 %v1619
  %2217 = vmatmul.mubr.f32.gmra.mrb[0].mxu0 %v1617
  %v2218 = vpop.f32.mrb[0].mxu0
  %v2219 = vadd.f32 %v2067, %v2218
  %v2220 = vpop.f32.mrb[0].mxu0
  %v2221 = vadd.f32 %v2069, %v2220
  %2222 = vmatprep.mubr.f32.mxu0 %v1625
  %2223 = vmatmul.mubr.f32.gmra.mrb[0].mxu0 %v1623
  %v2224 = vpop.f32.mrb[0].mxu0
  %v2225 = vadd.f32 %v2073, %v2224
  %v2226 = vpop.f32.mrb[0].mxu0
  %v2227 = vadd.f32 %v2075, %v2226
  %2228 = vdwg.mxu0
  %2229 = vmatprep.subr.mxu0 0.0
  %2230 = vmatpush1.msra.mxu0 %v1629
  %2231 = vmatprep.subr.mxu0 0.0
  %2232 = vmatpush1.msra.mxu0 %v1632
  %2233 = vmatprep.subr.mxu0 0.0
  %2234 = vmatpush1.msra.mxu0 %v1635
  %2235 = vmatprep.subr.mxu0 0.0
  %2236 = vmatpush1.msra.mxu0 %v1638
  %2237 = vmatprep.subr.mxu0 0.0
  %2238 = vmatpush1.msra.mxu0 %v1641
  %2239 = vmatprep.subr.mxu0 0.0
  %2240 = vmatpush1.msra.mxu0 %v1644
  %2241 = vmatprep.subr.mxu0 0.0
  %2242 = vmatpush1.msra.mxu0 %v1647
  %2243 = vmatprep.subr.mxu0 0.0
  %2244 = vmatpush1.msra.mxu0 %v1650
  %2245 = vmatprep.subr.mxu0 0.0
  %2246 = vmatpush1.msra.mxu0 %v1653
  %2247 = vmatprep.subr.mxu0 0.0
  %2248 = vmatpush1.msra.mxu0 %v1656
  %2249 = vmatprep.subr.mxu0 0.0
  %2250 = vmatpush1.msra.mxu0 %v1659
  %2251 = vmatprep.subr.mxu0 0.0
  %2252 = vmatpush1.msra.mxu0 %v1662
  %2253 = vmatprep.subr.mxu0 0.0
  %2254 = vmatpush1.msra.mxu0 %v1665
  %2255 = vmatprep.subr.mxu0 0.0
  %2256 = vmatpush1.msra.mxu0 %v1668
  %2257 = vmatprep.subr.mxu0 0.0
  %2258 = vmatpush1.msra.mxu0 %v1671
  %2259 = vmatprep.subr.mxu0 0.0
  %2260 = vmatpush1.msra.mxu0 %v1674
  %2261 = vmatprep.subr.mxu0 0.0
  %2262 = vmatpush1.msra.mxu0 %v1677
  %2263 = vmatprep.subr.mxu0 0.0
  %2264 = vmatpush1.msra.mxu0 %v1680
  %2265 = vmatprep.subr.mxu0 0.0
  %2266 = vmatpush1.msra.mxu0 %v1683
  %2267 = vmatprep.subr.mxu0 0.0
  %2268 = vmatpush1.msra.mxu0 %v1686
  %2269 = vmatprep.subr.mxu0 0.0
  %2270 = vmatpush1.msra.mxu0 %v1689
  %2271 = vmatprep.subr.mxu0 0.0
  %2272 = vmatpush1.msra.mxu0 %v1692
  %2273 = vmatprep.subr.mxu0 0.0
  %2274 = vmatpush1.msra.mxu0 %v1695
  %2275 = vmatprep.subr.mxu0 0.0
  %2276 = vmatpush1.msra.mxu0 %v1698
  %2277 = vmatprep.subr.mxu0 0.0
  %2278 = vmatpush1.msra.mxu0 %v1701
  %2279 = vmatprep.subr.mxu0 0.0
  %2280 = vmatpush1.msra.mxu0 %v1704
  %2281 = vmatprep.subr.mxu0 0.0
  %2282 = vmatpush1.msra.mxu0 %v1707
  %2283 = vmatprep.subr.mxu0 0.0
  %2284 = vmatpush1.msra.mxu0 %v1710
  %2285 = vmatprep.subr.mxu0 0.0
  %2286 = vmatpush1.msra.mxu0 %v1713
  %2287 = vmatprep.subr.mxu0 0.0
  %2288 = vmatpush1.msra.mxu0 %v1716
  %2289 = vmatprep.subr.mxu0 0.0
  %2290 = vmatpush1.msra.mxu0 %v1719
  %2291 = vmatprep.subr.mxu0 0.0
  %2292 = vmatpush1.msra.mxu0 %v1722
  %2293 = vmatprep.mubr.f32.mxu0 %v1619
  %2294 = vmatmul.mubr.f32.gmra.mrb[0].mxu0 %v1617
  %v2295 = vpop.f32.mrb[0].mxu0
  %v2296 = vadd.f32 %v2144, %v2295
  %v2297 = vpop.f32.mrb[0].mxu0
  %2298 = vmatprep.mubr.f32.mxu0 %v1625
  %2299 = vmatmul.mubr.f32.gmra.mrb[0].mxu0 %v1623
  %v2300 = vpop.f32.mrb[0].mxu0
  %v2301 = vadd.f32 %v2149, %v2300
  %v2302 = vpop.f32.mrb[0].mxu0
  %2303 = vdwg.mxu0
  %v2304 = vld [vmem:[%s5] sm:$0x7]
  %v2306 = vlaneseq
  %v2307 = vshrl.u32 %v2306, 7
  %v2308 = vsub.s32 0, %v2307
  %v2309 = vrot.slane %v2304, %v2308
  %v2310 = vlaneseq
  %v2311 = vshrl.u32 %v2310, 7
  %v2312 = vsub.s32 1, %v2311
  %v2313 = vrot.slane %v2304, %v2312
  %v2314 = vlaneseq
  %v2315 = vshrl.u32 %v2314, 7
  %v2316 = vsub.s32 2, %v2315
  %v2317 = vrot.slane %v2304, %v2316
  %v2321 = vadd.f32 %v2219, %v2309
  %v2322 = vadd.f32 %v2221, %v2313
  %v2323 = vadd.f32 %v2296, %v2317
  %v2324 = vadd.f32 %v2225, %v2309
  %v2325 = vadd.f32 %v2227, %v2313
  %v2326 = vadd.f32 %v2301, %v2317
  %2327 = vst [vmem:[%s6] sm:$0xff] %v2321
  %2328 = vst [vmem:[%s6 + $0x8] sm:$0xff] %v2322
  %2329 = vst.msk [vmem:[%s6 + $0x10] sm:$0xff] %vm513, %v2323
  %2330 = vst [vmem:[%s6 + $0x18] sm:$0xff] %v2324
  %2331 = vst [vmem:[%s6 + $0x20] sm:$0xff] %v2325
  %2332 = vst.msk [vmem:[%s6 + $0x28] sm:$0xff] %vm513, %v2326
  // Predicated region
  $region26: #{multihead_self_attention.1} parent=0 // pred_check
    _
  $region27: #{multihead_self_attention.1} parent=0 // pred_check_branch
    %2334 = sbr.rel (0) target = $region29
  $region28: #{multihead_self_attention.1} parent=0 // pred_region
    _
  $region29: #{multihead_self_attention.1} parent=0 // pred_fallthru
    _
  // Predicated region
  $region30: #{multihead_self_attention.1} parent=0 // pred_check
    _
  $region31: #{multihead_self_attention.1} parent=0 // pred_check_branch
    %2336 = sbr.rel (0) target = $region33
  $region32: #{multihead_self_attention.1} parent=0 // pred_region
    _
  $region33: #{multihead_self_attention.1} parent=0 // pred_fallthru
    _

</llo_original>
